<compile_context>
chip_gen: v7x
topology: tpu7x:2x2x1
jax: 0.10.0
libtpu: 0.0.40
codegen_flags: <defaults>
</compile_context>

<pallas_src>
import jax
import jax.numpy as jnp
from jax import lax
from jax.experimental import pallas as pl
from jax.experimental.pallas import tpu as pltpu

K = 7              # spatial conv kernel size
P = (K - 1) // 2   # padding = 3


def _strip_rows(h):
    """Row-strip height for the register-resident conv accumulator (8-32 rows)."""
    for s in (8, 16, 32):
        if h % s == 0:
            return s
    return h  # TODO(synk): ragged H falls back to a full-frame accumulator strip.


# ----------------------------- Pallas kernel --------------------------------

def _spatial_gate_kernel(x_ref, s_ref, o_ref, cpool_ref, shift_ref):
    """Fused ChannelPool -> 7x7 conv -> BN -> sigmoid -> gate (one batch element).

    x_ref:     (C, H, W)          VMEM, un-padded input block
    s_ref:     (100,)             SMEM f32:
                                   [0:49]   conv taps on the channel-max map
                                   [49:98]  conv taps on the channel-mean map
                                   [98]     folded BatchNorm scale
                                   [99]     folded BatchNorm bias
    o_ref:     (C, H, W)          VMEM output block
    cpool_ref: (2, H+2P, W+2P)    VMEM scratch, zero-bordered pooled maps
    shift_ref: (7, 2, H+2P, W)    VMEM scratch, lane-shifted copies of pooled maps
    """
    C, H, W = x_ref.shape

    # ---- hoist every SMEM scalar load out of the tap/strip loops -------------
    w = [s_ref[i] for i in range(2 * K * K)]
    bn_scale = s_ref[2 * K * K]
    bn_bias = s_ref[2 * K * K + 1]

    # ---- ChannelPool: ONE pass over the C slabs (running max + running sum) --
    run_max = x_ref[0].astype(jnp.float32)
    run_sum = run_max
    for c in range(1, C):
        xc = x_ref[c].astype(jnp.float32)
        run_max = jnp.maximum(run_max, xc)
        run_sum = run_sum + xc

    # ---- 'SAME' padding applied only to the 2 pooled maps (zero border) ------
    cpool_ref[...] = jnp.zeros_like(cpool_ref)
    cpool_ref[0, P:P + H, P:P + W] = run_max
    cpool_ref[1, P:P + H, P:P + W] = run_sum * (1.0 / C)

    # ---- hoist kx (lane-direction) shifts: 7 shifted copies of BOTH maps -----
    cp = cpool_ref[...]                        # (2, Hp, Wp)
    for kx in range(K):
        shift_ref[kx] = cp[:, :, kx:kx + W]    # (2, Hp, W)

    # ---- conv + BN + sigmoid + gating over row strips -------------------------
    SH = _strip_rows(H)
    n_strips = H // SH

    def strip_body(s, carry):
        h0 = pl.multiple_of(s * SH, SH)
        acc = jnp.zeros((SH, W), jnp.float32)
        for ky in range(K):
            for kx in range(K):
                t = ky * K + kx
                # one sublane-offset slice per tap, covering BOTH pooled maps
                win = shift_ref[kx, :, pl.ds(h0 + ky, SH), :]      # (2, SH, W)
                acc = acc + w[t] * win[0] + w[K * K + t] * win[1]

        # Inference-mode BatchNorm folded to scale/bias, then sigmoid (EUP exp).
        y = acc * bn_scale + bn_bias
        gate = 1.0 / (1.0 + jnp.exp(-y))                           # (SH, W)

        xs = x_ref[:, pl.ds(h0, SH), :]                            # (C, SH, W)
        o_ref[:, pl.ds(h0, SH), :] = (gate[None, :, :] * xs).astype(o_ref.dtype)
        return carry

    lax.fori_loop(0, n_strips, strip_body, 0)


# ------------------------------- wrapper -------------------------------------

def spatial_gate(x_nchw, params):
    """x: (N, C, H, W) float32 -> (N, C, H, W)."""
    N, C, H, W = x_nchw.shape
    Hp, Wp = H + 2 * P, W + 2 * P
    eps = 1e-5

    # Fold BatchNorm (inference) into one scale and one bias.
    bn_scale = params["bn_gamma"] / jnp.sqrt(params["bn_var"] + eps)
    bn_bias = params["bn_beta"] - params["bn_mean"] * bn_scale
    scalars = jnp.concatenate([
        params["w_spatial"].reshape(2 * K * K).astype(jnp.float32),
        bn_scale.reshape(1).astype(jnp.float32),
        bn_bias.reshape(1).astype(jnp.float32),
    ])                                                            # (100,)

    # Size the VMEM budget from the actual blocks (double-buffered) + scratch.
    block_bytes = C * H * W * 4
    scratch_bytes = (2 * Hp * Wp + K * 2 * Hp * W) * 4
    vmem_limit = max(32 << 20,
                     min(4 * block_bytes + scratch_bytes + (2 << 20), 100 << 20))

    cost = pl.CostEstimate(
        flops=int(N * H * W * (2 * C + 4 * K * K + C + 4)),
        transcendentals=int(N * H * W),
        bytes_accessed=int(2 * x_nchw.size * 4 + scalars.size * 4),
    )

    return pl.pallas_call(
        _spatial_gate_kernel,
        out_shape=jax.ShapeDtypeStruct((N, C, H, W), x_nchw.dtype),
        grid_spec=pltpu.PrefetchScalarGridSpec(
            num_scalar_prefetch=0,
            grid=(N,),
            in_specs=[
                pl.BlockSpec((None, C, H, W), lambda n: (n, 0, 0, 0)),
                pl.BlockSpec(memory_space=pltpu.MemorySpace.SMEM),
            ],
            out_specs=pl.BlockSpec((None, C, H, W), lambda n: (n, 0, 0, 0)),
            scratch_shapes=[
                pltpu.VMEM((2, Hp, Wp), jnp.float32),      # padded pooled maps
                pltpu.VMEM((K, 2, Hp, W), jnp.float32),    # lane-shifted copies
            ],
        ),
        compiler_params=pltpu.CompilerParams(
            dimension_semantics=("parallel",),
            vmem_limit_bytes=int(vmem_limit),
        ),
        cost_estimate=cost,
    )(x_nchw, scalars)


# --------------------------- params / reference ------------------------------

def init_params(key):
    k1, k2, k3, k4, k5 = jax.random.split(key, 5)
    return {
        # Conv2d(2 -> 1, kernel=7, bias=False), OIHW
        "w_spatial": 0.1 * jax.random.normal(k1, (1, 2, K, K), jnp.float32),
        # BatchNorm2d(1) inference params (non-trivial values to exercise the fold)
        "bn_gamma": 1.0 + 0.1 * jax.random.normal(k2, (1,), jnp.float32),
        "bn_beta": 0.1 * jax.random.normal(k3, (1,), jnp.float32),
        "bn_mean": 0.1 * jax.random.normal(k4, (1,), jnp.float32),
        "bn_var": 1.0 + 0.1 * jnp.abs(jax.random.normal(k5, (1,), jnp.float32)),
    }


def spatial_gate_ref(x, params):
    eps = 1e-5
    cmax = jnp.max(x, axis=1, keepdims=True)
    cmean = jnp.mean(x, axis=1, keepdims=True)
    xc = jnp.concatenate([cmax, cmean], axis=1)                    # (N, 2, H, W)
    y = jax.lax.conv_general_dilated(
        xc, params["w_spatial"], window_strides=(1, 1),
        padding=((P, P), (P, P)),
        dimension_numbers=("NCHW", "OIHW", "NCHW"))
    scale = params["bn_gamma"] / jnp.sqrt(params["bn_var"] + eps)
    bias = params["bn_beta"] - params["bn_mean"] * scale
    y = y * scale.reshape(1, -1, 1, 1) + bias.reshape(1, -1, 1, 1)
    return jax.nn.sigmoid(y) * x


# --------------------------------- main ---------------------------------------

if __name__ == "__main__":
    N, C, H, W = 2, 4, 16, 16

    key = jax.random.PRNGKey(0)
    kx, kp = jax.random.split(key)
    x = jax.random.normal(kx, (N, C, H, W), jnp.float32)
    params = init_params(kp)

    out = jax.block_until_ready(spatial_gate(x, params))
    assert out.shape == (N, C, H, W), out.shape

    ref = jax.block_until_ready(spatial_gate_ref(x, params))
    assert jnp.allclose(out, ref, rtol=1e-4, atol=1e-5), \
        float(jnp.max(jnp.abs(out - ref)))

    print("KERNEL_OK")
</pallas_src>

<mosaic_0001>
module attributes {stable_mosaic.version = 11 : i64} {
  func.func @_spatial_gate_kernel(%arg0: i32, %arg1: memref<1x4x16x16xf32, #tpu.memory_space<vmem>>, %arg2: memref<100xf32, #tpu.memory_space<smem>>, %arg3: memref<1x4x16x16xf32, #tpu.memory_space<vmem>>, %arg4: memref<2x22x22xf32, #tpu.memory_space<vmem>>, %arg5: memref<7x2x22x16xf32, #tpu.memory_space<vmem>>) attributes {dimension_semantics = [#tpu.dimension_semantics<parallel>], iteration_bounds = array<i64: 2>, scalar_prefetch = 0 : i64, scratch_operands = 2 : i64, tpu.core_type = #tpu.core_type<tc>, window_params = [{transform_indices = @transform_0, window_bounds = array<i64: 1, 4, 16, 16>}, {transform_indices = @transform_1, window_bounds = array<i64: 100>}, {transform_indices = @transform_2, window_bounds = array<i64: 1, 4, 16, 16>}]} {
    %c0 = arith.constant 0 : index
    %0 = memref.load %arg2[%c0] : memref<100xf32, #tpu.memory_space<smem>>
    %c1 = arith.constant 1 : index
    %1 = memref.load %arg2[%c1] : memref<100xf32, #tpu.memory_space<smem>>
    %c2 = arith.constant 2 : index
    %2 = memref.load %arg2[%c2] : memref<100xf32, #tpu.memory_space<smem>>
    %c3 = arith.constant 3 : index
    %3 = memref.load %arg2[%c3] : memref<100xf32, #tpu.memory_space<smem>>
    %c4 = arith.constant 4 : index
    %4 = memref.load %arg2[%c4] : memref<100xf32, #tpu.memory_space<smem>>
    %c5 = arith.constant 5 : index
    %5 = memref.load %arg2[%c5] : memref<100xf32, #tpu.memory_space<smem>>
    %c6 = arith.constant 6 : index
    %6 = memref.load %arg2[%c6] : memref<100xf32, #tpu.memory_space<smem>>
    %c7 = arith.constant 7 : index
    %7 = memref.load %arg2[%c7] : memref<100xf32, #tpu.memory_space<smem>>
    %c8 = arith.constant 8 : index
    %8 = memref.load %arg2[%c8] : memref<100xf32, #tpu.memory_space<smem>>
    %c9 = arith.constant 9 : index
    %9 = memref.load %arg2[%c9] : memref<100xf32, #tpu.memory_space<smem>>
    %c10 = arith.constant 10 : index
    %10 = memref.load %arg2[%c10] : memref<100xf32, #tpu.memory_space<smem>>
    %c11 = arith.constant 11 : index
    %11 = memref.load %arg2[%c11] : memref<100xf32, #tpu.memory_space<smem>>
    %c12 = arith.constant 12 : index
    %12 = memref.load %arg2[%c12] : memref<100xf32, #tpu.memory_space<smem>>
    %c13 = arith.constant 13 : index
    %13 = memref.load %arg2[%c13] : memref<100xf32, #tpu.memory_space<smem>>
    %c14 = arith.constant 14 : index
    %14 = memref.load %arg2[%c14] : memref<100xf32, #tpu.memory_space<smem>>
    %c15 = arith.constant 15 : index
    %15 = memref.load %arg2[%c15] : memref<100xf32, #tpu.memory_space<smem>>
    %c16 = arith.constant 16 : index
    %16 = memref.load %arg2[%c16] : memref<100xf32, #tpu.memory_space<smem>>
    %c17 = arith.constant 17 : index
    %17 = memref.load %arg2[%c17] : memref<100xf32, #tpu.memory_space<smem>>
    %c18 = arith.constant 18 : index
    %18 = memref.load %arg2[%c18] : memref<100xf32, #tpu.memory_space<smem>>
    %c19 = arith.constant 19 : index
    %19 = memref.load %arg2[%c19] : memref<100xf32, #tpu.memory_space<smem>>
    %c20 = arith.constant 20 : index
    %20 = memref.load %arg2[%c20] : memref<100xf32, #tpu.memory_space<smem>>
    %c21 = arith.constant 21 : index
    %21 = memref.load %arg2[%c21] : memref<100xf32, #tpu.memory_space<smem>>
    %c22 = arith.constant 22 : index
    %22 = memref.load %arg2[%c22] : memref<100xf32, #tpu.memory_space<smem>>
    %c23 = arith.constant 23 : index
    %23 = memref.load %arg2[%c23] : memref<100xf32, #tpu.memory_space<smem>>
    %c24 = arith.constant 24 : index
    %24 = memref.load %arg2[%c24] : memref<100xf32, #tpu.memory_space<smem>>
    %c25 = arith.constant 25 : index
    %25 = memref.load %arg2[%c25] : memref<100xf32, #tpu.memory_space<smem>>
    %c26 = arith.constant 26 : index
    %26 = memref.load %arg2[%c26] : memref<100xf32, #tpu.memory_space<smem>>
    %c27 = arith.constant 27 : index
    %27 = memref.load %arg2[%c27] : memref<100xf32, #tpu.memory_space<smem>>
    %c28 = arith.constant 28 : index
    %28 = memref.load %arg2[%c28] : memref<100xf32, #tpu.memory_space<smem>>
    %c29 = arith.constant 29 : index
    %29 = memref.load %arg2[%c29] : memref<100xf32, #tpu.memory_space<smem>>
    %c30 = arith.constant 30 : index
    %30 = memref.load %arg2[%c30] : memref<100xf32, #tpu.memory_space<smem>>
    %c31 = arith.constant 31 : index
    %31 = memref.load %arg2[%c31] : memref<100xf32, #tpu.memory_space<smem>>
    %c32 = arith.constant 32 : index
    %32 = memref.load %arg2[%c32] : memref<100xf32, #tpu.memory_space<smem>>
    %c33 = arith.constant 33 : index
    %33 = memref.load %arg2[%c33] : memref<100xf32, #tpu.memory_space<smem>>
    %c34 = arith.constant 34 : index
    %34 = memref.load %arg2[%c34] : memref<100xf32, #tpu.memory_space<smem>>
    %c35 = arith.constant 35 : index
    %35 = memref.load %arg2[%c35] : memref<100xf32, #tpu.memory_space<smem>>
    %c36 = arith.constant 36 : index
    %36 = memref.load %arg2[%c36] : memref<100xf32, #tpu.memory_space<smem>>
    %c37 = arith.constant 37 : index
    %37 = memref.load %arg2[%c37] : memref<100xf32, #tpu.memory_space<smem>>
    %c38 = arith.constant 38 : index
    %38 = memref.load %arg2[%c38] : memref<100xf32, #tpu.memory_space<smem>>
    %c39 = arith.constant 39 : index
    %39 = memref.load %arg2[%c39] : memref<100xf32, #tpu.memory_space<smem>>
    %c40 = arith.constant 40 : index
    %40 = memref.load %arg2[%c40] : memref<100xf32, #tpu.memory_space<smem>>
    %c41 = arith.constant 41 : index
    %41 = memref.load %arg2[%c41] : memref<100xf32, #tpu.memory_space<smem>>
    %c42 = arith.constant 42 : index
    %42 = memref.load %arg2[%c42] : memref<100xf32, #tpu.memory_space<smem>>
    %c43 = arith.constant 43 : index
    %43 = memref.load %arg2[%c43] : memref<100xf32, #tpu.memory_space<smem>>
    %c44 = arith.constant 44 : index
    %44 = memref.load %arg2[%c44] : memref<100xf32, #tpu.memory_space<smem>>
    %c45 = arith.constant 45 : index
    %45 = memref.load %arg2[%c45] : memref<100xf32, #tpu.memory_space<smem>>
    %c46 = arith.constant 46 : index
    %46 = memref.load %arg2[%c46] : memref<100xf32, #tpu.memory_space<smem>>
    %c47 = arith.constant 47 : index
    %47 = memref.load %arg2[%c47] : memref<100xf32, #tpu.memory_space<smem>>
    %c48 = arith.constant 48 : index
    %48 = memref.load %arg2[%c48] : memref<100xf32, #tpu.memory_space<smem>>
    %c49 = arith.constant 49 : index
    %49 = memref.load %arg2[%c49] : memref<100xf32, #tpu.memory_space<smem>>
    %c50 = arith.constant 50 : index
    %50 = memref.load %arg2[%c50] : memref<100xf32, #tpu.memory_space<smem>>
    %c51 = arith.constant 51 : index
    %51 = memref.load %arg2[%c51] : memref<100xf32, #tpu.memory_space<smem>>
    %c52 = arith.constant 52 : index
    %52 = memref.load %arg2[%c52] : memref<100xf32, #tpu.memory_space<smem>>
    %c53 = arith.constant 53 : index
    %53 = memref.load %arg2[%c53] : memref<100xf32, #tpu.memory_space<smem>>
    %c54 = arith.constant 54 : index
    %54 = memref.load %arg2[%c54] : memref<100xf32, #tpu.memory_space<smem>>
    %c55 = arith.constant 55 : index
    %55 = memref.load %arg2[%c55] : memref<100xf32, #tpu.memory_space<smem>>
    %c56 = arith.constant 56 : index
    %56 = memref.load %arg2[%c56] : memref<100xf32, #tpu.memory_space<smem>>
    %c57 = arith.constant 57 : index
    %57 = memref.load %arg2[%c57] : memref<100xf32, #tpu.memory_space<smem>>
    %c58 = arith.constant 58 : index
    %58 = memref.load %arg2[%c58] : memref<100xf32, #tpu.memory_space<smem>>
    %c59 = arith.constant 59 : index
    %59 = memref.load %arg2[%c59] : memref<100xf32, #tpu.memory_space<smem>>
    %c60 = arith.constant 60 : index
    %60 = memref.load %arg2[%c60] : memref<100xf32, #tpu.memory_space<smem>>
    %c61 = arith.constant 61 : index
    %61 = memref.load %arg2[%c61] : memref<100xf32, #tpu.memory_space<smem>>
    %c62 = arith.constant 62 : index
    %62 = memref.load %arg2[%c62] : memref<100xf32, #tpu.memory_space<smem>>
    %c63 = arith.constant 63 : index
    %63 = memref.load %arg2[%c63] : memref<100xf32, #tpu.memory_space<smem>>
    %c64 = arith.constant 64 : index
    %64 = memref.load %arg2[%c64] : memref<100xf32, #tpu.memory_space<smem>>
    %c65 = arith.constant 65 : index
    %65 = memref.load %arg2[%c65] : memref<100xf32, #tpu.memory_space<smem>>
    %c66 = arith.constant 66 : index
    %66 = memref.load %arg2[%c66] : memref<100xf32, #tpu.memory_space<smem>>
    %c67 = arith.constant 67 : index
    %67 = memref.load %arg2[%c67] : memref<100xf32, #tpu.memory_space<smem>>
    %c68 = arith.constant 68 : index
    %68 = memref.load %arg2[%c68] : memref<100xf32, #tpu.memory_space<smem>>
    %c69 = arith.constant 69 : index
    %69 = memref.load %arg2[%c69] : memref<100xf32, #tpu.memory_space<smem>>
    %c70 = arith.constant 70 : index
    %70 = memref.load %arg2[%c70] : memref<100xf32, #tpu.memory_space<smem>>
    %c71 = arith.constant 71 : index
    %71 = memref.load %arg2[%c71] : memref<100xf32, #tpu.memory_space<smem>>
    %c72 = arith.constant 72 : index
    %72 = memref.load %arg2[%c72] : memref<100xf32, #tpu.memory_space<smem>>
    %c73 = arith.constant 73 : index
    %73 = memref.load %arg2[%c73] : memref<100xf32, #tpu.memory_space<smem>>
    %c74 = arith.constant 74 : index
    %74 = memref.load %arg2[%c74] : memref<100xf32, #tpu.memory_space<smem>>
    %c75 = arith.constant 75 : index
    %75 = memref.load %arg2[%c75] : memref<100xf32, #tpu.memory_space<smem>>
    %c76 = arith.constant 76 : index
    %76 = memref.load %arg2[%c76] : memref<100xf32, #tpu.memory_space<smem>>
    %c77 = arith.constant 77 : index
    %77 = memref.load %arg2[%c77] : memref<100xf32, #tpu.memory_space<smem>>
    %c78 = arith.constant 78 : index
    %78 = memref.load %arg2[%c78] : memref<100xf32, #tpu.memory_space<smem>>
    %c79 = arith.constant 79 : index
    %79 = memref.load %arg2[%c79] : memref<100xf32, #tpu.memory_space<smem>>
    %c80 = arith.constant 80 : index
    %80 = memref.load %arg2[%c80] : memref<100xf32, #tpu.memory_space<smem>>
    %c81 = arith.constant 81 : index
    %81 = memref.load %arg2[%c81] : memref<100xf32, #tpu.memory_space<smem>>
    %c82 = arith.constant 82 : index
    %82 = memref.load %arg2[%c82] : memref<100xf32, #tpu.memory_space<smem>>
    %c83 = arith.constant 83 : index
    %83 = memref.load %arg2[%c83] : memref<100xf32, #tpu.memory_space<smem>>
    %c84 = arith.constant 84 : index
    %84 = memref.load %arg2[%c84] : memref<100xf32, #tpu.memory_space<smem>>
    %c85 = arith.constant 85 : index
    %85 = memref.load %arg2[%c85] : memref<100xf32, #tpu.memory_space<smem>>
    %c86 = arith.constant 86 : index
    %86 = memref.load %arg2[%c86] : memref<100xf32, #tpu.memory_space<smem>>
    %c87 = arith.constant 87 : index
    %87 = memref.load %arg2[%c87] : memref<100xf32, #tpu.memory_space<smem>>
    %c88 = arith.constant 88 : index
    %88 = memref.load %arg2[%c88] : memref<100xf32, #tpu.memory_space<smem>>
    %c89 = arith.constant 89 : index
    %89 = memref.load %arg2[%c89] : memref<100xf32, #tpu.memory_space<smem>>
    %c90 = arith.constant 90 : index
    %90 = memref.load %arg2[%c90] : memref<100xf32, #tpu.memory_space<smem>>
    %c91 = arith.constant 91 : index
    %91 = memref.load %arg2[%c91] : memref<100xf32, #tpu.memory_space<smem>>
    %c92 = arith.constant 92 : index
    %92 = memref.load %arg2[%c92] : memref<100xf32, #tpu.memory_space<smem>>
    %c93 = arith.constant 93 : index
    %93 = memref.load %arg2[%c93] : memref<100xf32, #tpu.memory_space<smem>>
    %c94 = arith.constant 94 : index
    %94 = memref.load %arg2[%c94] : memref<100xf32, #tpu.memory_space<smem>>
    %c95 = arith.constant 95 : index
    %95 = memref.load %arg2[%c95] : memref<100xf32, #tpu.memory_space<smem>>
    %c96 = arith.constant 96 : index
    %96 = memref.load %arg2[%c96] : memref<100xf32, #tpu.memory_space<smem>>
    %c97 = arith.constant 97 : index
    %97 = memref.load %arg2[%c97] : memref<100xf32, #tpu.memory_space<smem>>
    %c98 = arith.constant 98 : index
    %98 = memref.load %arg2[%c98] : memref<100xf32, #tpu.memory_space<smem>>
    %c99 = arith.constant 99 : index
    %99 = memref.load %arg2[%c99] : memref<100xf32, #tpu.memory_space<smem>>
    %c0_0 = arith.constant 0 : index
    %c0_1 = arith.constant 0 : index
    %c0_2 = arith.constant 0 : index
    %c0_3 = arith.constant 0 : index
    %100 = vector.load %arg1[%c0_0, %c0_1, %c0_2, %c0_3] : memref<1x4x16x16xf32, #tpu.memory_space<vmem>>, vector<1x1x16x16xf32>
    %101 = vector.shape_cast %100 : vector<1x1x16x16xf32> to vector<16x16xf32>
    %c0_4 = arith.constant 0 : index
    %c1_5 = arith.constant 1 : index
    %c0_6 = arith.constant 0 : index
    %c0_7 = arith.constant 0 : index
    %102 = vector.load %arg1[%c0_4, %c1_5, %c0_6, %c0_7] : memref<1x4x16x16xf32, #tpu.memory_space<vmem>>, vector<1x1x16x16xf32>
    %103 = vector.shape_cast %102 : vector<1x1x16x16xf32> to vector<16x16xf32>
    %104 = arith.maximumf %101, %103 : vector<16x16xf32>
    %105 = arith.addf %101, %103 : vector<16x16xf32>
    %c0_8 = arith.constant 0 : index
    %c2_9 = arith.constant 2 : index
    %c0_10 = arith.constant 0 : index
    %c0_11 = arith.constant 0 : index
    %106 = vector.load %arg1[%c0_8, %c2_9, %c0_10, %c0_11] : memref<1x4x16x16xf32, #tpu.memory_space<vmem>>, vector<1x1x16x16xf32>
    %107 = vector.shape_cast %106 : vector<1x1x16x16xf32> to vector<16x16xf32>
    %108 = arith.maximumf %104, %107 : vector<16x16xf32>
    %109 = arith.addf %105, %107 : vector<16x16xf32>
    %c0_12 = arith.constant 0 : index
    %c3_13 = arith.constant 3 : index
    %c0_14 = arith.constant 0 : index
    %c0_15 = arith.constant 0 : index
    %110 = vector.load %arg1[%c0_12, %c3_13, %c0_14, %c0_15] : memref<1x4x16x16xf32, #tpu.memory_space<vmem>>, vector<1x1x16x16xf32>
    %111 = vector.shape_cast %110 : vector<1x1x16x16xf32> to vector<16x16xf32>
    %112 = arith.maximumf %108, %111 : vector<16x16xf32>
    %113 = arith.addf %109, %111 : vector<16x16xf32>
    %cst = arith.constant 0.000000e+00 : f32
    %114 = vector.broadcast %cst : f32 to vector<2x22x22xf32>
    %c0_16 = arith.constant 0 : index
    %c0_17 = arith.constant 0 : index
    %c0_18 = arith.constant 0 : index
    %115 = vector.load %arg4[%c0_16, %c0_17, %c0_18] : memref<2x22x22xf32, #tpu.memory_space<vmem>>, vector<2x22x22xf32>
    tpu.vector_store %arg4[%c0_16, %c0_17, %c0_18], %114 {strides = array<i32>} : memref<2x22x22xf32, #tpu.memory_space<vmem>>, vector<2x22x22xf32>,
    %c0_19 = arith.constant 0 : index
    %c3_20 = arith.constant 3 : index
    %c3_21 = arith.constant 3 : index
    %116 = vector.load %arg4[%c0_19, %c3_20, %c3_21] : memref<2x22x22xf32, #tpu.memory_space<vmem>>, vector<1x16x16xf32>
    %117 = vector.shape_cast %116 : vector<1x16x16xf32> to vector<16x16xf32>
    %118 = vector.shape_cast %112 : vector<16x16xf32> to vector<1x16x16xf32>
    tpu.vector_store %arg4[%c0_19, %c3_20, %c3_21], %118 {strides = array<i32>} : memref<2x22x22xf32, #tpu.memory_space<vmem>>, vector<1x16x16xf32>,
    %cst_22 = arith.constant 2.500000e-01 : f32
    %119 = vector.broadcast %cst_22 : f32 to vector<16x16xf32>
    %120 = arith.mulf %113, %119 : vector<16x16xf32>
    %c1_23 = arith.constant 1 : index
    %c3_24 = arith.constant 3 : index
    %c3_25 = arith.constant 3 : index
    %121 = vector.load %arg4[%c1_23, %c3_24, %c3_25] : memref<2x22x22xf32, #tpu.memory_space<vmem>>, vector<1x16x16xf32>
    %122 = vector.shape_cast %121 : vector<1x16x16xf32> to vector<16x16xf32>
    %123 = vector.shape_cast %120 : vector<16x16xf32> to vector<1x16x16xf32>
    tpu.vector_store %arg4[%c1_23, %c3_24, %c3_25], %123 {strides = array<i32>} : memref<2x22x22xf32, #tpu.memory_space<vmem>>, vector<1x16x16xf32>,
    %c0_26 = arith.constant 0 : index
    %c0_27 = arith.constant 0 : index
    %c0_28 = arith.constant 0 : index
    %124 = vector.load %arg4[%c0_26, %c0_27, %c0_28] : memref<2x22x22xf32, #tpu.memory_space<vmem>>, vector<2x22x22xf32>
    %125 = vector.extract_strided_slice %124 {offsets = [0, 0, 0], sizes = [2, 22, 16], strides = [1, 1, 1]} : vector<2x22x22xf32> to vector<2x22x16xf32>
    %c0_29 = arith.constant 0 : index
    %c0_30 = arith.constant 0 : index
    %c0_31 = arith.constant 0 : index
    %c0_32 = arith.constant 0 : index
    %126 = vector.load %arg5[%c0_29, %c0_30, %c0_31, %c0_32] : memref<7x2x22x16xf32, #tpu.memory_space<vmem>>, vector<1x2x22x16xf32>
    %127 = vector.shape_cast %126 : vector<1x2x22x16xf32> to vector<2x22x16xf32>
    %128 = vector.shape_cast %125 : vector<2x22x16xf32> to vector<1x2x22x16xf32>
    tpu.vector_store %arg5[%c0_29, %c0_30, %c0_31, %c0_32], %128 {strides = array<i32>} : memref<7x2x22x16xf32, #tpu.memory_space<vmem>>, vector<1x2x22x16xf32>,
    %129 = vector.extract_strided_slice %124 {offsets = [0, 0, 1], sizes = [2, 22, 16], strides = [1, 1, 1]} : vector<2x22x22xf32> to vector<2x22x16xf32>
    %c1_33 = arith.constant 1 : index
    %c0_34 = arith.constant 0 : index
    %c0_35 = arith.constant 0 : index
    %c0_36 = arith.constant 0 : index
    %130 = vector.load %arg5[%c1_33, %c0_34, %c0_35, %c0_36] : memref<7x2x22x16xf32, #tpu.memory_space<vmem>>, vector<1x2x22x16xf32>
    %131 = vector.shape_cast %130 : vector<1x2x22x16xf32> to vector<2x22x16xf32>
    %132 = vector.shape_cast %129 : vector<2x22x16xf32> to vector<1x2x22x16xf32>
    tpu.vector_store %arg5[%c1_33, %c0_34, %c0_35, %c0_36], %132 {strides = array<i32>} : memref<7x2x22x16xf32, #tpu.memory_space<vmem>>, vector<1x2x22x16xf32>,
    %133 = vector.extract_strided_slice %124 {offsets = [0, 0, 2], sizes = [2, 22, 16], strides = [1, 1, 1]} : vector<2x22x22xf32> to vector<2x22x16xf32>
    %c2_37 = arith.constant 2 : index
    %c0_38 = arith.constant 0 : index
    %c0_39 = arith.constant 0 : index
    %c0_40 = arith.constant 0 : index
    %134 = vector.load %arg5[%c2_37, %c0_38, %c0_39, %c0_40] : memref<7x2x22x16xf32, #tpu.memory_space<vmem>>, vector<1x2x22x16xf32>
    %135 = vector.shape_cast %134 : vector<1x2x22x16xf32> to vector<2x22x16xf32>
    %136 = vector.shape_cast %133 : vector<2x22x16xf32> to vector<1x2x22x16xf32>
    tpu.vector_store %arg5[%c2_37, %c0_38, %c0_39, %c0_40], %136 {strides = array<i32>} : memref<7x2x22x16xf32, #tpu.memory_space<vmem>>, vector<1x2x22x16xf32>,
    %137 = vector.extract_strided_slice %124 {offsets = [0, 0, 3], sizes = [2, 22, 16], strides = [1, 1, 1]} : vector<2x22x22xf32> to vector<2x22x16xf32>
    %c3_41 = arith.constant 3 : index
    %c0_42 = arith.constant 0 : index
    %c0_43 = arith.constant 0 : index
    %c0_44 = arith.constant 0 : index
    %138 = vector.load %arg5[%c3_41, %c0_42, %c0_43, %c0_44] : memref<7x2x22x16xf32, #tpu.memory_space<vmem>>, vector<1x2x22x16xf32>
    %139 = vector.shape_cast %138 : vector<1x2x22x16xf32> to vector<2x22x16xf32>
    %140 = vector.shape_cast %137 : vector<2x22x16xf32> to vector<1x2x22x16xf32>
    tpu.vector_store %arg5[%c3_41, %c0_42, %c0_43, %c0_44], %140 {strides = array<i32>} : memref<7x2x22x16xf32, #tpu.memory_space<vmem>>, vector<1x2x22x16xf32>,
    %141 = vector.extract_strided_slice %124 {offsets = [0, 0, 4], sizes = [2, 22, 16], strides = [1, 1, 1]} : vector<2x22x22xf32> to vector<2x22x16xf32>
    %c4_45 = arith.constant 4 : index
    %c0_46 = arith.constant 0 : index
    %c0_47 = arith.constant 0 : index
    %c0_48 = arith.constant 0 : index
    %142 = vector.load %arg5[%c4_45, %c0_46, %c0_47, %c0_48] : memref<7x2x22x16xf32, #tpu.memory_space<vmem>>, vector<1x2x22x16xf32>
    %143 = vector.shape_cast %142 : vector<1x2x22x16xf32> to vector<2x22x16xf32>
    %144 = vector.shape_cast %141 : vector<2x22x16xf32> to vector<1x2x22x16xf32>
    tpu.vector_store %arg5[%c4_45, %c0_46, %c0_47, %c0_48], %144 {strides = array<i32>} : memref<7x2x22x16xf32, #tpu.memory_space<vmem>>, vector<1x2x22x16xf32>,
    %145 = vector.extract_strided_slice %124 {offsets = [0, 0, 5], sizes = [2, 22, 16], strides = [1, 1, 1]} : vector<2x22x22xf32> to vector<2x22x16xf32>
    %c5_49 = arith.constant 5 : index
    %c0_50 = arith.constant 0 : index
    %c0_51 = arith.constant 0 : index
    %c0_52 = arith.constant 0 : index
    %146 = vector.load %arg5[%c5_49, %c0_50, %c0_51, %c0_52] : memref<7x2x22x16xf32, #tpu.memory_space<vmem>>, vector<1x2x22x16xf32>
    %147 = vector.shape_cast %146 : vector<1x2x22x16xf32> to vector<2x22x16xf32>
    %148 = vector.shape_cast %145 : vector<2x22x16xf32> to vector<1x2x22x16xf32>
    tpu.vector_store %arg5[%c5_49, %c0_50, %c0_51, %c0_52], %148 {strides = array<i32>} : memref<7x2x22x16xf32, #tpu.memory_space<vmem>>, vector<1x2x22x16xf32>,
    %149 = vector.extract_strided_slice %124 {offsets = [0, 0, 6], sizes = [2, 22, 16], strides = [1, 1, 1]} : vector<2x22x22xf32> to vector<2x22x16xf32>
    %c6_53 = arith.constant 6 : index
    %c0_54 = arith.constant 0 : index
    %c0_55 = arith.constant 0 : index
    %c0_56 = arith.constant 0 : index
    %150 = vector.load %arg5[%c6_53, %c0_54, %c0_55, %c0_56] : memref<7x2x22x16xf32, #tpu.memory_space<vmem>>, vector<1x2x22x16xf32>
    %151 = vector.shape_cast %150 : vector<1x2x22x16xf32> to vector<2x22x16xf32>
    %152 = vector.shape_cast %149 : vector<2x22x16xf32> to vector<1x2x22x16xf32>
    tpu.vector_store %arg5[%c6_53, %c0_54, %c0_55, %c0_56], %152 {strides = array<i32>} : memref<7x2x22x16xf32, #tpu.memory_space<vmem>>, vector<1x2x22x16xf32>,
    %c0_i32 = arith.constant 0 : i32
    %c2_i32 = arith.constant 2 : i32
    %153 = arith.addi %c0_i32, %c2_i32 : i32
    %c1_i32 = arith.constant 1 : i32
    scf.for %arg6 = %c0_i32 to %153 step %c1_i32  : i32 {
      %c8_i32 = arith.constant 8 : i32
      %154 = arith.muli %arg6, %c8_i32 : i32
      %155 = tpu.assume_multiple %154, 8 : i32
      %cst_58 = arith.constant 0.000000e+00 : f32
      %156 = vector.broadcast %cst_58 : f32 to vector<8x16xf32>
      %c0_i32_59 = arith.constant 0 : i32
      %157 = arith.addi %155, %c0_i32_59 : i32
      %c0_60 = arith.constant 0 : index
      %c0_61 = arith.constant 0 : index
      %158 = arith.index_cast %157 : i32 to index
      %c0_62 = arith.constant 0 : index
      %159 = vector.load %arg5[%c0_60, %c0_61, %158, %c0_62] : memref<7x2x22x16xf32, #tpu.memory_space<vmem>>, vector<1x2x8x16xf32>
      %160 = vector.shape_cast %159 : vector<1x2x8x16xf32> to vector<2x8x16xf32>
      %161 = vector.extract_strided_slice %160 {offsets = [0, 0, 0], sizes = [1, 8, 16], strides = [1, 1, 1]} : vector<2x8x16xf32> to vector<1x8x16xf32>
      %162 = vector.shape_cast %161 : vector<1x8x16xf32> to vector<8x16xf32>
      %163 = vector.broadcast %0 : f32 to vector<8x16xf32>
      %164 = arith.mulf %163, %162 : vector<8x16xf32>
      %165 = arith.addf %156, %164 : vector<8x16xf32>
      %166 = vector.extract_strided_slice %160 {offsets = [1, 0, 0], sizes = [1, 8, 16], strides = [1, 1, 1]} : vector<2x8x16xf32> to vector<1x8x16xf32>
      %167 = vector.shape_cast %166 : vector<1x8x16xf32> to vector<8x16xf32>
      %168 = vector.broadcast %49 : f32 to vector<8x16xf32>
      %169 = arith.mulf %168, %167 : vector<8x16xf32>
      %170 = arith.addf %165, %169 : vector<8x16xf32>
      %c0_i32_63 = arith.constant 0 : i32
      %171 = arith.addi %155, %c0_i32_63 : i32
      %c1_64 = arith.constant 1 : index
      %c0_65 = arith.constant 0 : index
      %172 = arith.index_cast %171 : i32 to index
      %c0_66 = arith.constant 0 : index
      %173 = vector.load %arg5[%c1_64, %c0_65, %172, %c0_66] : memref<7x2x22x16xf32, #tpu.memory_space<vmem>>, vector<1x2x8x16xf32>
      %174 = vector.shape_cast %173 : vector<1x2x8x16xf32> to vector<2x8x16xf32>
      %175 = vector.extract_strided_slice %174 {offsets = [0, 0, 0], sizes = [1, 8, 16], strides = [1, 1, 1]} : vector<2x8x16xf32> to vector<1x8x16xf32>
      %176 = vector.shape_cast %175 : vector<1x8x16xf32> to vector<8x16xf32>
      %177 = vector.broadcast %1 : f32 to vector<8x16xf32>
      %178 = arith.mulf %177, %176 : vector<8x16xf32>
      %179 = arith.addf %170, %178 : vector<8x16xf32>
      %180 = vector.extract_strided_slice %174 {offsets = [1, 0, 0], sizes = [1, 8, 16], strides = [1, 1, 1]} : vector<2x8x16xf32> to vector<1x8x16xf32>
      %181 = vector.shape_cast %180 : vector<1x8x16xf32> to vector<8x16xf32>
      %182 = vector.broadcast %50 : f32 to vector<8x16xf32>
      %183 = arith.mulf %182, %181 : vector<8x16xf32>
      %184 = arith.addf %179, %183 : vector<8x16xf32>
      %c0_i32_67 = arith.constant 0 : i32
      %185 = arith.addi %155, %c0_i32_67 : i32
      %c2_68 = arith.constant 2 : index
      %c0_69 = arith.constant 0 : index
      %186 = arith.index_cast %185 : i32 to index
      %c0_70 = arith.constant 0 : index
      %187 = vector.load %arg5[%c2_68, %c0_69, %186, %c0_70] : memref<7x2x22x16xf32, #tpu.memory_space<vmem>>, vector<1x2x8x16xf32>
      %188 = vector.shape_cast %187 : vector<1x2x8x16xf32> to vector<2x8x16xf32>
      %189 = vector.extract_strided_slice %188 {offsets = [0, 0, 0], sizes = [1, 8, 16], strides = [1, 1, 1]} : vector<2x8x16xf32> to vector<1x8x16xf32>
      %190 = vector.shape_cast %189 : vector<1x8x16xf32> to vector<8x16xf32>
      %191 = vector.broadcast %2 : f32 to vector<8x16xf32>
      %192 = arith.mulf %191, %190 : vector<8x16xf32>
      %193 = arith.addf %184, %192 : vector<8x16xf32>
      %194 = vector.extract_strided_slice %188 {offsets = [1, 0, 0], sizes = [1, 8, 16], strides = [1, 1, 1]} : vector<2x8x16xf32> to vector<1x8x16xf32>
      %195 = vector.shape_cast %194 : vector<1x8x16xf32> to vector<8x16xf32>
      %196 = vector.broadcast %51 : f32 to vector<8x16xf32>
      %197 = arith.mulf %196, %195 : vector<8x16xf32>
      %198 = arith.addf %193, %197 : vector<8x16xf32>
      %c0_i32_71 = arith.constant 0 : i32
      %199 = arith.addi %155, %c0_i32_71 : i32
      %c3_72 = arith.constant 3 : index
      %c0_73 = arith.constant 0 : index
      %200 = arith.index_cast %199 : i32 to index
      %c0_74 = arith.constant 0 : index
      %201 = vector.load %arg5[%c3_72, %c0_73, %200, %c0_74] : memref<7x2x22x16xf32, #tpu.memory_space<vmem>>, vector<1x2x8x16xf32>
      %202 = vector.shape_cast %201 : vector<1x2x8x16xf32> to vector<2x8x16xf32>
      %203 = vector.extract_strided_slice %202 {offsets = [0, 0, 0], sizes = [1, 8, 16], strides = [1, 1, 1]} : vector<2x8x16xf32> to vector<1x8x16xf32>
      %204 = vector.shape_cast %203 : vector<1x8x16xf32> to vector<8x16xf32>
      %205 = vector.broadcast %3 : f32 to vector<8x16xf32>
      %206 = arith.mulf %205, %204 : vector<8x16xf32>
      %207 = arith.addf %198, %206 : vector<8x16xf32>
      %208 = vector.extract_strided_slice %202 {offsets = [1, 0, 0], sizes = [1, 8, 16], strides = [1, 1, 1]} : vector<2x8x16xf32> to vector<1x8x16xf32>
      %209 = vector.shape_cast %208 : vector<1x8x16xf32> to vector<8x16xf32>
      %210 = vector.broadcast %52 : f32 to vector<8x16xf32>
      %211 = arith.mulf %210, %209 : vector<8x16xf32>
      %212 = arith.addf %207, %211 : vector<8x16xf32>
      %c0_i32_75 = arith.constant 0 : i32
      %213 = arith.addi %155, %c0_i32_75 : i32
      %c4_76 = arith.constant 4 : index
      %c0_77 = arith.constant 0 : index
      %214 = arith.index_cast %213 : i32 to index
      %c0_78 = arith.constant 0 : index
      %215 = vector.load %arg5[%c4_76, %c0_77, %214, %c0_78] : memref<7x2x22x16xf32, #tpu.memory_space<vmem>>, vector<1x2x8x16xf32>
      %216 = vector.shape_cast %215 : vector<1x2x8x16xf32> to vector<2x8x16xf32>
      %217 = vector.extract_strided_slice %216 {offsets = [0, 0, 0], sizes = [1, 8, 16], strides = [1, 1, 1]} : vector<2x8x16xf32> to vector<1x8x16xf32>
      %218 = vector.shape_cast %217 : vector<1x8x16xf32> to vector<8x16xf32>
      %219 = vector.broadcast %4 : f32 to vector<8x16xf32>
      %220 = arith.mulf %219, %218 : vector<8x16xf32>
      %221 = arith.addf %212, %220 : vector<8x16xf32>
      %222 = vector.extract_strided_slice %216 {offsets = [1, 0, 0], sizes = [1, 8, 16], strides = [1, 1, 1]} : vector<2x8x16xf32> to vector<1x8x16xf32>
      %223 = vector.shape_cast %222 : vector<1x8x16xf32> to vector<8x16xf32>
      %224 = vector.broadcast %53 : f32 to vector<8x16xf32>
      %225 = arith.mulf %224, %223 : vector<8x16xf32>
      %226 = arith.addf %221, %225 : vector<8x16xf32>
      %c0_i32_79 = arith.constant 0 : i32
      %227 = arith.addi %155, %c0_i32_79 : i32
      %c5_80 = arith.constant 5 : index
      %c0_81 = arith.constant 0 : index
      %228 = arith.index_cast %227 : i32 to index
      %c0_82 = arith.constant 0 : index
      %229 = vector.load %arg5[%c5_80, %c0_81, %228, %c0_82] : memref<7x2x22x16xf32, #tpu.memory_space<vmem>>, vector<1x2x8x16xf32>
      %230 = vector.shape_cast %229 : vector<1x2x8x16xf32> to vector<2x8x16xf32>
      %231 = vector.extract_strided_slice %230 {offsets = [0, 0, 0], sizes = [1, 8, 16], strides = [1, 1, 1]} : vector<2x8x16xf32> to vector<1x8x16xf32>
      %232 = vector.shape_cast %231 : vector<1x8x16xf32> to vector<8x16xf32>
      %233 = vector.broadcast %5 : f32 to vector<8x16xf32>
      %234 = arith.mulf %233, %232 : vector<8x16xf32>
      %235 = arith.addf %226, %234 : vector<8x16xf32>
      %236 = vector.extract_strided_slice %230 {offsets = [1, 0, 0], sizes = [1, 8, 16], strides = [1, 1, 1]} : vector<2x8x16xf32> to vector<1x8x16xf32>
      %237 = vector.shape_cast %236 : vector<1x8x16xf32> to vector<8x16xf32>
      %238 = vector.broadcast %54 : f32 to vector<8x16xf32>
      %239 = arith.mulf %238, %237 : vector<8x16xf32>
      %240 = arith.addf %235, %239 : vector<8x16xf32>
      %c0_i32_83 = arith.constant 0 : i32
      %241 = arith.addi %155, %c0_i32_83 : i32
      %c6_84 = arith.constant 6 : index
      %c0_85 = arith.constant 0 : index
      %242 = arith.index_cast %241 : i32 to index
      %c0_86 = arith.constant 0 : index
      %243 = vector.load %arg5[%c6_84, %c0_85, %242, %c0_86] : memref<7x2x22x16xf32, #tpu.memory_space<vmem>>, vector<1x2x8x16xf32>
      %244 = vector.shape_cast %243 : vector<1x2x8x16xf32> to vector<2x8x16xf32>
      %245 = vector.extract_strided_slice %244 {offsets = [0, 0, 0], sizes = [1, 8, 16], strides = [1, 1, 1]} : vector<2x8x16xf32> to vector<1x8x16xf32>
      %246 = vector.shape_cast %245 : vector<1x8x16xf32> to vector<8x16xf32>
      %247 = vector.broadcast %6 : f32 to vector<8x16xf32>
      %248 = arith.mulf %247, %246 : vector<8x16xf32>
      %249 = arith.addf %240, %248 : vector<8x16xf32>
      %250 = vector.extract_strided_slice %244 {offsets = [1, 0, 0], sizes = [1, 8, 16], strides = [1, 1, 1]} : vector<2x8x16xf32> to vector<1x8x16xf32>
      %251 = vector.shape_cast %250 : vector<1x8x16xf32> to vector<8x16xf32>
      %252 = vector.broadcast %55 : f32 to vector<8x16xf32>
      %253 = arith.mulf %252, %251 : vector<8x16xf32>
      %254 = arith.addf %249, %253 : vector<8x16xf32>
      %c1_i32_87 = arith.constant 1 : i32
      %255 = arith.addi %155, %c1_i32_87 : i32
      %c0_88 = arith.constant 0 : index
      %c0_89 = arith.constant 0 : index
      %256 = arith.index_cast %255 : i32 to index
      %c0_90 = arith.constant 0 : index
      %257 = vector.load %arg5[%c0_88, %c0_89, %256, %c0_90] : memref<7x2x22x16xf32, #tpu.memory_space<vmem>>, vector<1x2x8x16xf32>
      %258 = vector.shape_cast %257 : vector<1x2x8x16xf32> to vector<2x8x16xf32>
      %259 = vector.extract_strided_slice %258 {offsets = [0, 0, 0], sizes = [1, 8, 16], strides = [1, 1, 1]} : vector<2x8x16xf32> to vector<1x8x16xf32>
      %260 = vector.shape_cast %259 : vector<1x8x16xf32> to vector<8x16xf32>
      %261 = vector.broadcast %7 : f32 to vector<8x16xf32>
      %262 = arith.mulf %261, %260 : vector<8x16xf32>
      %263 = arith.addf %254, %262 : vector<8x16xf32>
      %264 = vector.extract_strided_slice %258 {offsets = [1, 0, 0], sizes = [1, 8, 16], strides = [1, 1, 1]} : vector<2x8x16xf32> to vector<1x8x16xf32>
      %265 = vector.shape_cast %264 : vector<1x8x16xf32> to vector<8x16xf32>
      %266 = vector.broadcast %56 : f32 to vector<8x16xf32>
      %267 = arith.mulf %266, %265 : vector<8x16xf32>
      %268 = arith.addf %263, %267 : vector<8x16xf32>
      %c1_i32_91 = arith.constant 1 : i32
      %269 = arith.addi %155, %c1_i32_91 : i32
      %c1_92 = arith.constant 1 : index
      %c0_93 = arith.constant 0 : index
      %270 = arith.index_cast %269 : i32 to index
      %c0_94 = arith.constant 0 : index
      %271 = vector.load %arg5[%c1_92, %c0_93, %270, %c0_94] : memref<7x2x22x16xf32, #tpu.memory_space<vmem>>, vector<1x2x8x16xf32>
      %272 = vector.shape_cast %271 : vector<1x2x8x16xf32> to vector<2x8x16xf32>
      %273 = vector.extract_strided_slice %272 {offsets = [0, 0, 0], sizes = [1, 8, 16], strides = [1, 1, 1]} : vector<2x8x16xf32> to vector<1x8x16xf32>
      %274 = vector.shape_cast %273 : vector<1x8x16xf32> to vector<8x16xf32>
      %275 = vector.broadcast %8 : f32 to vector<8x16xf32>
      %276 = arith.mulf %275, %274 : vector<8x16xf32>
      %277 = arith.addf %268, %276 : vector<8x16xf32>
      %278 = vector.extract_strided_slice %272 {offsets = [1, 0, 0], sizes = [1, 8, 16], strides = [1, 1, 1]} : vector<2x8x16xf32> to vector<1x8x16xf32>
      %279 = vector.shape_cast %278 : vector<1x8x16xf32> to vector<8x16xf32>
      %280 = vector.broadcast %57 : f32 to vector<8x16xf32>
      %281 = arith.mulf %280, %279 : vector<8x16xf32>
      %282 = arith.addf %277, %281 : vector<8x16xf32>
      %c1_i32_95 = arith.constant 1 : i32
      %283 = arith.addi %155, %c1_i32_95 : i32
      %c2_96 = arith.constant 2 : index
      %c0_97 = arith.constant 0 : index
      %284 = arith.index_cast %283 : i32 to index
      %c0_98 = arith.constant 0 : index
      %285 = vector.load %arg5[%c2_96, %c0_97, %284, %c0_98] : memref<7x2x22x16xf32, #tpu.memory_space<vmem>>, vector<1x2x8x16xf32>
      %286 = vector.shape_cast %285 : vector<1x2x8x16xf32> to vector<2x8x16xf32>
      %287 = vector.extract_strided_slice %286 {offsets = [0, 0, 0], sizes = [1, 8, 16], strides = [1, 1, 1]} : vector<2x8x16xf32> to vector<1x8x16xf32>
      %288 = vector.shape_cast %287 : vector<1x8x16xf32> to vector<8x16xf32>
      %289 = vector.broadcast %9 : f32 to vector<8x16xf32>
      %290 = arith.mulf %289, %288 : vector<8x16xf32>
      %291 = arith.addf %282, %290 : vector<8x16xf32>
      %292 = vector.extract_strided_slice %286 {offsets = [1, 0, 0], sizes = [1, 8, 16], strides = [1, 1, 1]} : vector<2x8x16xf32> to vector<1x8x16xf32>
      %293 = vector.shape_cast %292 : vector<1x8x16xf32> to vector<8x16xf32>
      %294 = vector.broadcast %58 : f32 to vector<8x16xf32>
      %295 = arith.mulf %294, %293 : vector<8x16xf32>
      %296 = arith.addf %291, %295 : vector<8x16xf32>
      %c1_i32_99 = arith.constant 1 : i32
      %297 = arith.addi %155, %c1_i32_99 : i32
      %c3_100 = arith.constant 3 : index
      %c0_101 = arith.constant 0 : index
      %298 = arith.index_cast %297 : i32 to index
      %c0_102 = arith.constant 0 : index
      %299 = vector.load %arg5[%c3_100, %c0_101, %298, %c0_102] : memref<7x2x22x16xf32, #tpu.memory_space<vmem>>, vector<1x2x8x16xf32>
      %300 = vector.shape_cast %299 : vector<1x2x8x16xf32> to vector<2x8x16xf32>
      %301 = vector.extract_strided_slice %300 {offsets = [0, 0, 0], sizes = [1, 8, 16], strides = [1, 1, 1]} : vector<2x8x16xf32> to vector<1x8x16xf32>
      %302 = vector.shape_cast %301 : vector<1x8x16xf32> to vector<8x16xf32>
      %303 = vector.broadcast %10 : f32 to vector<8x16xf32>
      %304 = arith.mulf %303, %302 : vector<8x16xf32>
      %305 = arith.addf %296, %304 : vector<8x16xf32>
      %306 = vector.extract_strided_slice %300 {offsets = [1, 0, 0], sizes = [1, 8, 16], strides = [1, 1, 1]} : vector<2x8x16xf32> to vector<1x8x16xf32>
      %307 = vector.shape_cast %306 : vector<1x8x16xf32> to vector<8x16xf32>
      %308 = vector.broadcast %59 : f32 to vector<8x16xf32>
      %309 = arith.mulf %308, %307 : vector<8x16xf32>
      %310 = arith.addf %305, %309 : vector<8x16xf32>
      %c1_i32_103 = arith.constant 1 : i32
      %311 = arith.addi %155, %c1_i32_103 : i32
      %c4_104 = arith.constant 4 : index
      %c0_105 = arith.constant 0 : index
      %312 = arith.index_cast %311 : i32 to index
      %c0_106 = arith.constant 0 : index
      %313 = vector.load %arg5[%c4_104, %c0_105, %312, %c0_106] : memref<7x2x22x16xf32, #tpu.memory_space<vmem>>, vector<1x2x8x16xf32>
      %314 = vector.shape_cast %313 : vector<1x2x8x16xf32> to vector<2x8x16xf32>
      %315 = vector.extract_strided_slice %314 {offsets = [0, 0, 0], sizes = [1, 8, 16], strides = [1, 1, 1]} : vector<2x8x16xf32> to vector<1x8x16xf32>
      %316 = vector.shape_cast %315 : vector<1x8x16xf32> to vector<8x16xf32>
      %317 = vector.broadcast %11 : f32 to vector<8x16xf32>
      %318 = arith.mulf %317, %316 : vector<8x16xf32>
      %319 = arith.addf %310, %318 : vector<8x16xf32>
      %320 = vector.extract_strided_slice %314 {offsets = [1, 0, 0], sizes = [1, 8, 16], strides = [1, 1, 1]} : vector<2x8x16xf32> to vector<1x8x16xf32>
      %321 = vector.shape_cast %320 : vector<1x8x16xf32> to vector<8x16xf32>
      %322 = vector.broadcast %60 : f32 to vector<8x16xf32>
      %323 = arith.mulf %322, %321 : vector<8x16xf32>
      %324 = arith.addf %319, %323 : vector<8x16xf32>
      %c1_i32_107 = arith.constant 1 : i32
      %325 = arith.addi %155, %c1_i32_107 : i32
      %c5_108 = arith.constant 5 : index
      %c0_109 = arith.constant 0 : index
      %326 = arith.index_cast %325 : i32 to index
      %c0_110 = arith.constant 0 : index
      %327 = vector.load %arg5[%c5_108, %c0_109, %326, %c0_110] : memref<7x2x22x16xf32, #tpu.memory_space<vmem>>, vector<1x2x8x16xf32>
      %328 = vector.shape_cast %327 : vector<1x2x8x16xf32> to vector<2x8x16xf32>
      %329 = vector.extract_strided_slice %328 {offsets = [0, 0, 0], sizes = [1, 8, 16], strides = [1, 1, 1]} : vector<2x8x16xf32> to vector<1x8x16xf32>
      %330 = vector.shape_cast %329 : vector<1x8x16xf32> to vector<8x16xf32>
      %331 = vector.broadcast %12 : f32 to vector<8x16xf32>
      %332 = arith.mulf %331, %330 : vector<8x16xf32>
      %333 = arith.addf %324, %332 : vector<8x16xf32>
      %334 = vector.extract_strided_slice %328 {offsets = [1, 0, 0], sizes = [1, 8, 16], strides = [1, 1, 1]} : vector<2x8x16xf32> to vector<1x8x16xf32>
      %335 = vector.shape_cast %334 : vector<1x8x16xf32> to vector<8x16xf32>
      %336 = vector.broadcast %61 : f32 to vector<8x16xf32>
      %337 = arith.mulf %336, %335 : vector<8x16xf32>
      %338 = arith.addf %333, %337 : vector<8x16xf32>
      %c1_i32_111 = arith.constant 1 : i32
      %339 = arith.addi %155, %c1_i32_111 : i32
      %c6_112 = arith.constant 6 : index
      %c0_113 = arith.constant 0 : index
      %340 = arith.index_cast %339 : i32 to index
      %c0_114 = arith.constant 0 : index
      %341 = vector.load %arg5[%c6_112, %c0_113, %340, %c0_114] : memref<7x2x22x16xf32, #tpu.memory_space<vmem>>, vector<1x2x8x16xf32>
      %342 = vector.shape_cast %341 : vector<1x2x8x16xf32> to vector<2x8x16xf32>
      %343 = vector.extract_strided_slice %342 {offsets = [0, 0, 0], sizes = [1, 8, 16], strides = [1, 1, 1]} : vector<2x8x16xf32> to vector<1x8x16xf32>
      %344 = vector.shape_cast %343 : vector<1x8x16xf32> to vector<8x16xf32>
      %345 = vector.broadcast %13 : f32 to vector<8x16xf32>
      %346 = arith.mulf %345, %344 : vector<8x16xf32>
      %347 = arith.addf %338, %346 : vector<8x16xf32>
      %348 = vector.extract_strided_slice %342 {offsets = [1, 0, 0], sizes = [1, 8, 16], strides = [1, 1, 1]} : vector<2x8x16xf32> to vector<1x8x16xf32>
      %349 = vector.shape_cast %348 : vector<1x8x16xf32> to vector<8x16xf32>
      %350 = vector.broadcast %62 : f32 to vector<8x16xf32>
      %351 = arith.mulf %350, %349 : vector<8x16xf32>
      %352 = arith.addf %347, %351 : vector<8x16xf32>
      %c2_i32_115 = arith.constant 2 : i32
      %353 = arith.addi %155, %c2_i32_115 : i32
      %c0_116 = arith.constant 0 : index
      %c0_117 = arith.constant 0 : index
      %354 = arith.index_cast %353 : i32 to index
      %c0_118 = arith.constant 0 : index
      %355 = vector.load %arg5[%c0_116, %c0_117, %354, %c0_118] : memref<7x2x22x16xf32, #tpu.memory_space<vmem>>, vector<1x2x8x16xf32>
      %356 = vector.shape_cast %355 : vector<1x2x8x16xf32> to vector<2x8x16xf32>
      %357 = vector.extract_strided_slice %356 {offsets = [0, 0, 0], sizes = [1, 8, 16], strides = [1, 1, 1]} : vector<2x8x16xf32> to vector<1x8x16xf32>
      %358 = vector.shape_cast %357 : vector<1x8x16xf32> to vector<8x16xf32>
      %359 = vector.broadcast %14 : f32 to vector<8x16xf32>
      %360 = arith.mulf %359, %358 : vector<8x16xf32>
      %361 = arith.addf %352, %360 : vector<8x16xf32>
      %362 = vector.extract_strided_slice %356 {offsets = [1, 0, 0], sizes = [1, 8, 16], strides = [1, 1, 1]} : vector<2x8x16xf32> to vector<1x8x16xf32>
      %363 = vector.shape_cast %362 : vector<1x8x16xf32> to vector<8x16xf32>
      %364 = vector.broadcast %63 : f32 to vector<8x16xf32>
      %365 = arith.mulf %364, %363 : vector<8x16xf32>
      %366 = arith.addf %361, %365 : vector<8x16xf32>
      %c2_i32_119 = arith.constant 2 : i32
      %367 = arith.addi %155, %c2_i32_119 : i32
      %c1_120 = arith.constant 1 : index
      %c0_121 = arith.constant 0 : index
      %368 = arith.index_cast %367 : i32 to index
      %c0_122 = arith.constant 0 : index
      %369 = vector.load %arg5[%c1_120, %c0_121, %368, %c0_122] : memref<7x2x22x16xf32, #tpu.memory_space<vmem>>, vector<1x2x8x16xf32>
      %370 = vector.shape_cast %369 : vector<1x2x8x16xf32> to vector<2x8x16xf32>
      %371 = vector.extract_strided_slice %370 {offsets = [0, 0, 0], sizes = [1, 8, 16], strides = [1, 1, 1]} : vector<2x8x16xf32> to vector<1x8x16xf32>
      %372 = vector.shape_cast %371 : vector<1x8x16xf32> to vector<8x16xf32>
      %373 = vector.broadcast %15 : f32 to vector<8x16xf32>
      %374 = arith.mulf %373, %372 : vector<8x16xf32>
      %375 = arith.addf %366, %374 : vector<8x16xf32>
      %376 = vector.extract_strided_slice %370 {offsets = [1, 0, 0], sizes = [1, 8, 16], strides = [1, 1, 1]} : vector<2x8x16xf32> to vector<1x8x16xf32>
      %377 = vector.shape_cast %376 : vector<1x8x16xf32> to vector<8x16xf32>
      %378 = vector.broadcast %64 : f32 to vector<8x16xf32>
      %379 = arith.mulf %378, %377 : vector<8x16xf32>
      %380 = arith.addf %375, %379 : vector<8x16xf32>
      %c2_i32_123 = arith.constant 2 : i32
      %381 = arith.addi %155, %c2_i32_123 : i32
      %c2_124 = arith.constant 2 : index
      %c0_125 = arith.constant 0 : index
      %382 = arith.index_cast %381 : i32 to index
      %c0_126 = arith.constant 0 : index
      %383 = vector.load %arg5[%c2_124, %c0_125, %382, %c0_126] : memref<7x2x22x16xf32, #tpu.memory_space<vmem>>, vector<1x2x8x16xf32>
      %384 = vector.shape_cast %383 : vector<1x2x8x16xf32> to vector<2x8x16xf32>
      %385 = vector.extract_strided_slice %384 {offsets = [0, 0, 0], sizes = [1, 8, 16], strides = [1, 1, 1]} : vector<2x8x16xf32> to vector<1x8x16xf32>
      %386 = vector.shape_cast %385 : vector<1x8x16xf32> to vector<8x16xf32>
      %387 = vector.broadcast %16 : f32 to vector<8x16xf32>
      %388 = arith.mulf %387, %386 : vector<8x16xf32>
      %389 = arith.addf %380, %388 : vector<8x16xf32>
      %390 = vector.extract_strided_slice %384 {offsets = [1, 0, 0], sizes = [1, 8, 16], strides = [1, 1, 1]} : vector<2x8x16xf32> to vector<1x8x16xf32>
      %391 = vector.shape_cast %390 : vector<1x8x16xf32> to vector<8x16xf32>
      %392 = vector.broadcast %65 : f32 to vector<8x16xf32>
      %393 = arith.mulf %392, %391 : vector<8x16xf32>
      %394 = arith.addf %389, %393 : vector<8x16xf32>
      %c2_i32_127 = arith.constant 2 : i32
      %395 = arith.addi %155, %c2_i32_127 : i32
      %c3_128 = arith.constant 3 : index
      %c0_129 = arith.constant 0 : index
      %396 = arith.index_cast %395 : i32 to index
      %c0_130 = arith.constant 0 : index
      %397 = vector.load %arg5[%c3_128, %c0_129, %396, %c0_130] : memref<7x2x22x16xf32, #tpu.memory_space<vmem>>, vector<1x2x8x16xf32>
      %398 = vector.shape_cast %397 : vector<1x2x8x16xf32> to vector<2x8x16xf32>
      %399 = vector.extract_strided_slice %398 {offsets = [0, 0, 0], sizes = [1, 8, 16], strides = [1, 1, 1]} : vector<2x8x16xf32> to vector<1x8x16xf32>
      %400 = vector.shape_cast %399 : vector<1x8x16xf32> to vector<8x16xf32>
      %401 = vector.broadcast %17 : f32 to vector<8x16xf32>
      %402 = arith.mulf %401, %400 : vector<8x16xf32>
      %403 = arith.addf %394, %402 : vector<8x16xf32>
      %404 = vector.extract_strided_slice %398 {offsets = [1, 0, 0], sizes = [1, 8, 16], strides = [1, 1, 1]} : vector<2x8x16xf32> to vector<1x8x16xf32>
      %405 = vector.shape_cast %404 : vector<1x8x16xf32> to vector<8x16xf32>
      %406 = vector.broadcast %66 : f32 to vector<8x16xf32>
      %407 = arith.mulf %406, %405 : vector<8x16xf32>
      %408 = arith.addf %403, %407 : vector<8x16xf32>
      %c2_i32_131 = arith.constant 2 : i32
      %409 = arith.addi %155, %c2_i32_131 : i32
      %c4_132 = arith.constant 4 : index
      %c0_133 = arith.constant 0 : index
      %410 = arith.index_cast %409 : i32 to index
      %c0_134 = arith.constant 0 : index
      %411 = vector.load %arg5[%c4_132, %c0_133, %410, %c0_134] : memref<7x2x22x16xf32, #tpu.memory_space<vmem>>, vector<1x2x8x16xf32>
      %412 = vector.shape_cast %411 : vector<1x2x8x16xf32> to vector<2x8x16xf32>
      %413 = vector.extract_strided_slice %412 {offsets = [0, 0, 0], sizes = [1, 8, 16], strides = [1, 1, 1]} : vector<2x8x16xf32> to vector<1x8x16xf32>
      %414 = vector.shape_cast %413 : vector<1x8x16xf32> to vector<8x16xf32>
      %415 = vector.broadcast %18 : f32 to vector<8x16xf32>
      %416 = arith.mulf %415, %414 : vector<8x16xf32>
      %417 = arith.addf %408, %416 : vector<8x16xf32>
      %418 = vector.extract_strided_slice %412 {offsets = [1, 0, 0], sizes = [1, 8, 16], strides = [1, 1, 1]} : vector<2x8x16xf32> to vector<1x8x16xf32>
      %419 = vector.shape_cast %418 : vector<1x8x16xf32> to vector<8x16xf32>
      %420 = vector.broadcast %67 : f32 to vector<8x16xf32>
      %421 = arith.mulf %420, %419 : vector<8x16xf32>
      %422 = arith.addf %417, %421 : vector<8x16xf32>
      %c2_i32_135 = arith.constant 2 : i32
      %423 = arith.addi %155, %c2_i32_135 : i32
      %c5_136 = arith.constant 5 : index
      %c0_137 = arith.constant 0 : index
      %424 = arith.index_cast %423 : i32 to index
      %c0_138 = arith.constant 0 : index
      %425 = vector.load %arg5[%c5_136, %c0_137, %424, %c0_138] : memref<7x2x22x16xf32, #tpu.memory_space<vmem>>, vector<1x2x8x16xf32>
      %426 = vector.shape_cast %425 : vector<1x2x8x16xf32> to vector<2x8x16xf32>
      %427 = vector.extract_strided_slice %426 {offsets = [0, 0, 0], sizes = [1, 8, 16], strides = [1, 1, 1]} : vector<2x8x16xf32> to vector<1x8x16xf32>
      %428 = vector.shape_cast %427 : vector<1x8x16xf32> to vector<8x16xf32>
      %429 = vector.broadcast %19 : f32 to vector<8x16xf32>
      %430 = arith.mulf %429, %428 : vector<8x16xf32>
      %431 = arith.addf %422, %430 : vector<8x16xf32>
      %432 = vector.extract_strided_slice %426 {offsets = [1, 0, 0], sizes = [1, 8, 16], strides = [1, 1, 1]} : vector<2x8x16xf32> to vector<1x8x16xf32>
      %433 = vector.shape_cast %432 : vector<1x8x16xf32> to vector<8x16xf32>
      %434 = vector.broadcast %68 : f32 to vector<8x16xf32>
      %435 = arith.mulf %434, %433 : vector<8x16xf32>
      %436 = arith.addf %431, %435 : vector<8x16xf32>
      %c2_i32_139 = arith.constant 2 : i32
      %437 = arith.addi %155, %c2_i32_139 : i32
      %c6_140 = arith.constant 6 : index
      %c0_141 = arith.constant 0 : index
      %438 = arith.index_cast %437 : i32 to index
      %c0_142 = arith.constant 0 : index
      %439 = vector.load %arg5[%c6_140, %c0_141, %438, %c0_142] : memref<7x2x22x16xf32, #tpu.memory_space<vmem>>, vector<1x2x8x16xf32>
      %440 = vector.shape_cast %439 : vector<1x2x8x16xf32> to vector<2x8x16xf32>
      %441 = vector.extract_strided_slice %440 {offsets = [0, 0, 0], sizes = [1, 8, 16], strides = [1, 1, 1]} : vector<2x8x16xf32> to vector<1x8x16xf32>
      %442 = vector.shape_cast %441 : vector<1x8x16xf32> to vector<8x16xf32>
      %443 = vector.broadcast %20 : f32 to vector<8x16xf32>
      %444 = arith.mulf %443, %442 : vector<8x16xf32>
      %445 = arith.addf %436, %444 : vector<8x16xf32>
      %446 = vector.extract_strided_slice %440 {offsets = [1, 0, 0], sizes = [1, 8, 16], strides = [1, 1, 1]} : vector<2x8x16xf32> to vector<1x8x16xf32>
      %447 = vector.shape_cast %446 : vector<1x8x16xf32> to vector<8x16xf32>
      %448 = vector.broadcast %69 : f32 to vector<8x16xf32>
      %449 = arith.mulf %448, %447 : vector<8x16xf32>
      %450 = arith.addf %445, %449 : vector<8x16xf32>
      %c3_i32 = arith.constant 3 : i32
      %451 = arith.addi %155, %c3_i32 : i32
      %c0_143 = arith.constant 0 : index
      %c0_144 = arith.constant 0 : index
      %452 = arith.index_cast %451 : i32 to index
      %c0_145 = arith.constant 0 : index
      %453 = vector.load %arg5[%c0_143, %c0_144, %452, %c0_145] : memref<7x2x22x16xf32, #tpu.memory_space<vmem>>, vector<1x2x8x16xf32>
      %454 = vector.shape_cast %453 : vector<1x2x8x16xf32> to vector<2x8x16xf32>
      %455 = vector.extract_strided_slice %454 {offsets = [0, 0, 0], sizes = [1, 8, 16], strides = [1, 1, 1]} : vector<2x8x16xf32> to vector<1x8x16xf32>
      %456 = vector.shape_cast %455 : vector<1x8x16xf32> to vector<8x16xf32>
      %457 = vector.broadcast %21 : f32 to vector<8x16xf32>
      %458 = arith.mulf %457, %456 : vector<8x16xf32>
      %459 = arith.addf %450, %458 : vector<8x16xf32>
      %460 = vector.extract_strided_slice %454 {offsets = [1, 0, 0], sizes = [1, 8, 16], strides = [1, 1, 1]} : vector<2x8x16xf32> to vector<1x8x16xf32>
      %461 = vector.shape_cast %460 : vector<1x8x16xf32> to vector<8x16xf32>
      %462 = vector.broadcast %70 : f32 to vector<8x16xf32>
      %463 = arith.mulf %462, %461 : vector<8x16xf32>
      %464 = arith.addf %459, %463 : vector<8x16xf32>
      %c3_i32_146 = arith.constant 3 : i32
      %465 = arith.addi %155, %c3_i32_146 : i32
      %c1_147 = arith.constant 1 : index
      %c0_148 = arith.constant 0 : index
      %466 = arith.index_cast %465 : i32 to index
      %c0_149 = arith.constant 0 : index
      %467 = vector.load %arg5[%c1_147, %c0_148, %466, %c0_149] : memref<7x2x22x16xf32, #tpu.memory_space<vmem>>, vector<1x2x8x16xf32>
      %468 = vector.shape_cast %467 : vector<1x2x8x16xf32> to vector<2x8x16xf32>
      %469 = vector.extract_strided_slice %468 {offsets = [0, 0, 0], sizes = [1, 8, 16], strides = [1, 1, 1]} : vector<2x8x16xf32> to vector<1x8x16xf32>
      %470 = vector.shape_cast %469 : vector<1x8x16xf32> to vector<8x16xf32>
      %471 = vector.broadcast %22 : f32 to vector<8x16xf32>
      %472 = arith.mulf %471, %470 : vector<8x16xf32>
      %473 = arith.addf %464, %472 : vector<8x16xf32>
      %474 = vector.extract_strided_slice %468 {offsets = [1, 0, 0], sizes = [1, 8, 16], strides = [1, 1, 1]} : vector<2x8x16xf32> to vector<1x8x16xf32>
      %475 = vector.shape_cast %474 : vector<1x8x16xf32> to vector<8x16xf32>
      %476 = vector.broadcast %71 : f32 to vector<8x16xf32>
      %477 = arith.mulf %476, %475 : vector<8x16xf32>
      %478 = arith.addf %473, %477 : vector<8x16xf32>
      %c3_i32_150 = arith.constant 3 : i32
      %479 = arith.addi %155, %c3_i32_150 : i32
      %c2_151 = arith.constant 2 : index
      %c0_152 = arith.constant 0 : index
      %480 = arith.index_cast %479 : i32 to index
      %c0_153 = arith.constant 0 : index
      %481 = vector.load %arg5[%c2_151, %c0_152, %480, %c0_153] : memref<7x2x22x16xf32, #tpu.memory_space<vmem>>, vector<1x2x8x16xf32>
      %482 = vector.shape_cast %481 : vector<1x2x8x16xf32> to vector<2x8x16xf32>
      %483 = vector.extract_strided_slice %482 {offsets = [0, 0, 0], sizes = [1, 8, 16], strides = [1, 1, 1]} : vector<2x8x16xf32> to vector<1x8x16xf32>
      %484 = vector.shape_cast %483 : vector<1x8x16xf32> to vector<8x16xf32>
      %485 = vector.broadcast %23 : f32 to vector<8x16xf32>
      %486 = arith.mulf %485, %484 : vector<8x16xf32>
      %487 = arith.addf %478, %486 : vector<8x16xf32>
      %488 = vector.extract_strided_slice %482 {offsets = [1, 0, 0], sizes = [1, 8, 16], strides = [1, 1, 1]} : vector<2x8x16xf32> to vector<1x8x16xf32>
      %489 = vector.shape_cast %488 : vector<1x8x16xf32> to vector<8x16xf32>
      %490 = vector.broadcast %72 : f32 to vector<8x16xf32>
      %491 = arith.mulf %490, %489 : vector<8x16xf32>
      %492 = arith.addf %487, %491 : vector<8x16xf32>
      %c3_i32_154 = arith.constant 3 : i32
      %493 = arith.addi %155, %c3_i32_154 : i32
      %c3_155 = arith.constant 3 : index
      %c0_156 = arith.constant 0 : index
      %494 = arith.index_cast %493 : i32 to index
      %c0_157 = arith.constant 0 : index
      %495 = vector.load %arg5[%c3_155, %c0_156, %494, %c0_157] : memref<7x2x22x16xf32, #tpu.memory_space<vmem>>, vector<1x2x8x16xf32>
      %496 = vector.shape_cast %495 : vector<1x2x8x16xf32> to vector<2x8x16xf32>
      %497 = vector.extract_strided_slice %496 {offsets = [0, 0, 0], sizes = [1, 8, 16], strides = [1, 1, 1]} : vector<2x8x16xf32> to vector<1x8x16xf32>
      %498 = vector.shape_cast %497 : vector<1x8x16xf32> to vector<8x16xf32>
      %499 = vector.broadcast %24 : f32 to vector<8x16xf32>
      %500 = arith.mulf %499, %498 : vector<8x16xf32>
      %501 = arith.addf %492, %500 : vector<8x16xf32>
      %502 = vector.extract_strided_slice %496 {offsets = [1, 0, 0], sizes = [1, 8, 16], strides = [1, 1, 1]} : vector<2x8x16xf32> to vector<1x8x16xf32>
      %503 = vector.shape_cast %502 : vector<1x8x16xf32> to vector<8x16xf32>
      %504 = vector.broadcast %73 : f32 to vector<8x16xf32>
      %505 = arith.mulf %504, %503 : vector<8x16xf32>
      %506 = arith.addf %501, %505 : vector<8x16xf32>
      %c3_i32_158 = arith.constant 3 : i32
      %507 = arith.addi %155, %c3_i32_158 : i32
      %c4_159 = arith.constant 4 : index
      %c0_160 = arith.constant 0 : index
      %508 = arith.index_cast %507 : i32 to index
      %c0_161 = arith.constant 0 : index
      %509 = vector.load %arg5[%c4_159, %c0_160, %508, %c0_161] : memref<7x2x22x16xf32, #tpu.memory_space<vmem>>, vector<1x2x8x16xf32>
      %510 = vector.shape_cast %509 : vector<1x2x8x16xf32> to vector<2x8x16xf32>
      %511 = vector.extract_strided_slice %510 {offsets = [0, 0, 0], sizes = [1, 8, 16], strides = [1, 1, 1]} : vector<2x8x16xf32> to vector<1x8x16xf32>
      %512 = vector.shape_cast %511 : vector<1x8x16xf32> to vector<8x16xf32>
      %513 = vector.broadcast %25 : f32 to vector<8x16xf32>
      %514 = arith.mulf %513, %512 : vector<8x16xf32>
      %515 = arith.addf %506, %514 : vector<8x16xf32>
      %516 = vector.extract_strided_slice %510 {offsets = [1, 0, 0], sizes = [1, 8, 16], strides = [1, 1, 1]} : vector<2x8x16xf32> to vector<1x8x16xf32>
      %517 = vector.shape_cast %516 : vector<1x8x16xf32> to vector<8x16xf32>
      %518 = vector.broadcast %74 : f32 to vector<8x16xf32>
      %519 = arith.mulf %518, %517 : vector<8x16xf32>
      %520 = arith.addf %515, %519 : vector<8x16xf32>
      %c3_i32_162 = arith.constant 3 : i32
      %521 = arith.addi %155, %c3_i32_162 : i32
      %c5_163 = arith.constant 5 : index
      %c0_164 = arith.constant 0 : index
      %522 = arith.index_cast %521 : i32 to index
      %c0_165 = arith.constant 0 : index
      %523 = vector.load %arg5[%c5_163, %c0_164, %522, %c0_165] : memref<7x2x22x16xf32, #tpu.memory_space<vmem>>, vector<1x2x8x16xf32>
      %524 = vector.shape_cast %523 : vector<1x2x8x16xf32> to vector<2x8x16xf32>
      %525 = vector.extract_strided_slice %524 {offsets = [0, 0, 0], sizes = [1, 8, 16], strides = [1, 1, 1]} : vector<2x8x16xf32> to vector<1x8x16xf32>
      %526 = vector.shape_cast %525 : vector<1x8x16xf32> to vector<8x16xf32>
      %527 = vector.broadcast %26 : f32 to vector<8x16xf32>
      %528 = arith.mulf %527, %526 : vector<8x16xf32>
      %529 = arith.addf %520, %528 : vector<8x16xf32>
      %530 = vector.extract_strided_slice %524 {offsets = [1, 0, 0], sizes = [1, 8, 16], strides = [1, 1, 1]} : vector<2x8x16xf32> to vector<1x8x16xf32>
      %531 = vector.shape_cast %530 : vector<1x8x16xf32> to vector<8x16xf32>
      %532 = vector.broadcast %75 : f32 to vector<8x16xf32>
      %533 = arith.mulf %532, %531 : vector<8x16xf32>
      %534 = arith.addf %529, %533 : vector<8x16xf32>
      %c3_i32_166 = arith.constant 3 : i32
      %535 = arith.addi %155, %c3_i32_166 : i32
      %c6_167 = arith.constant 6 : index
      %c0_168 = arith.constant 0 : index
      %536 = arith.index_cast %535 : i32 to index
      %c0_169 = arith.constant 0 : index
      %537 = vector.load %arg5[%c6_167, %c0_168, %536, %c0_169] : memref<7x2x22x16xf32, #tpu.memory_space<vmem>>, vector<1x2x8x16xf32>
      %538 = vector.shape_cast %537 : vector<1x2x8x16xf32> to vector<2x8x16xf32>
      %539 = vector.extract_strided_slice %538 {offsets = [0, 0, 0], sizes = [1, 8, 16], strides = [1, 1, 1]} : vector<2x8x16xf32> to vector<1x8x16xf32>
      %540 = vector.shape_cast %539 : vector<1x8x16xf32> to vector<8x16xf32>
      %541 = vector.broadcast %27 : f32 to vector<8x16xf32>
      %542 = arith.mulf %541, %540 : vector<8x16xf32>
      %543 = arith.addf %534, %542 : vector<8x16xf32>
      %544 = vector.extract_strided_slice %538 {offsets = [1, 0, 0], sizes = [1, 8, 16], strides = [1, 1, 1]} : vector<2x8x16xf32> to vector<1x8x16xf32>
      %545 = vector.shape_cast %544 : vector<1x8x16xf32> to vector<8x16xf32>
      %546 = vector.broadcast %76 : f32 to vector<8x16xf32>
      %547 = arith.mulf %546, %545 : vector<8x16xf32>
      %548 = arith.addf %543, %547 : vector<8x16xf32>
      %c4_i32 = arith.constant 4 : i32
      %549 = arith.addi %155, %c4_i32 : i32
      %c0_170 = arith.constant 0 : index
      %c0_171 = arith.constant 0 : index
      %550 = arith.index_cast %549 : i32 to index
      %c0_172 = arith.constant 0 : index
      %551 = vector.load %arg5[%c0_170, %c0_171, %550, %c0_172] : memref<7x2x22x16xf32, #tpu.memory_space<vmem>>, vector<1x2x8x16xf32>
      %552 = vector.shape_cast %551 : vector<1x2x8x16xf32> to vector<2x8x16xf32>
      %553 = vector.extract_strided_slice %552 {offsets = [0, 0, 0], sizes = [1, 8, 16], strides = [1, 1, 1]} : vector<2x8x16xf32> to vector<1x8x16xf32>
      %554 = vector.shape_cast %553 : vector<1x8x16xf32> to vector<8x16xf32>
      %555 = vector.broadcast %28 : f32 to vector<8x16xf32>
      %556 = arith.mulf %555, %554 : vector<8x16xf32>
      %557 = arith.addf %548, %556 : vector<8x16xf32>
      %558 = vector.extract_strided_slice %552 {offsets = [1, 0, 0], sizes = [1, 8, 16], strides = [1, 1, 1]} : vector<2x8x16xf32> to vector<1x8x16xf32>
      %559 = vector.shape_cast %558 : vector<1x8x16xf32> to vector<8x16xf32>
      %560 = vector.broadcast %77 : f32 to vector<8x16xf32>
      %561 = arith.mulf %560, %559 : vector<8x16xf32>
      %562 = arith.addf %557, %561 : vector<8x16xf32>
      %c4_i32_173 = arith.constant 4 : i32
      %563 = arith.addi %155, %c4_i32_173 : i32
      %c1_174 = arith.constant 1 : index
      %c0_175 = arith.constant 0 : index
      %564 = arith.index_cast %563 : i32 to index
      %c0_176 = arith.constant 0 : index
      %565 = vector.load %arg5[%c1_174, %c0_175, %564, %c0_176] : memref<7x2x22x16xf32, #tpu.memory_space<vmem>>, vector<1x2x8x16xf32>
      %566 = vector.shape_cast %565 : vector<1x2x8x16xf32> to vector<2x8x16xf32>
      %567 = vector.extract_strided_slice %566 {offsets = [0, 0, 0], sizes = [1, 8, 16], strides = [1, 1, 1]} : vector<2x8x16xf32> to vector<1x8x16xf32>
      %568 = vector.shape_cast %567 : vector<1x8x16xf32> to vector<8x16xf32>
      %569 = vector.broadcast %29 : f32 to vector<8x16xf32>
      %570 = arith.mulf %569, %568 : vector<8x16xf32>
      %571 = arith.addf %562, %570 : vector<8x16xf32>
      %572 = vector.extract_strided_slice %566 {offsets = [1, 0, 0], sizes = [1, 8, 16], strides = [1, 1, 1]} : vector<2x8x16xf32> to vector<1x8x16xf32>
      %573 = vector.shape_cast %572 : vector<1x8x16xf32> to vector<8x16xf32>
      %574 = vector.broadcast %78 : f32 to vector<8x16xf32>
      %575 = arith.mulf %574, %573 : vector<8x16xf32>
      %576 = arith.addf %571, %575 : vector<8x16xf32>
      %c4_i32_177 = arith.constant 4 : i32
      %577 = arith.addi %155, %c4_i32_177 : i32
      %c2_178 = arith.constant 2 : index
      %c0_179 = arith.constant 0 : index
      %578 = arith.index_cast %577 : i32 to index
      %c0_180 = arith.constant 0 : index
      %579 = vector.load %arg5[%c2_178, %c0_179, %578, %c0_180] : memref<7x2x22x16xf32, #tpu.memory_space<vmem>>, vector<1x2x8x16xf32>
      %580 = vector.shape_cast %579 : vector<1x2x8x16xf32> to vector<2x8x16xf32>
      %581 = vector.extract_strided_slice %580 {offsets = [0, 0, 0], sizes = [1, 8, 16], strides = [1, 1, 1]} : vector<2x8x16xf32> to vector<1x8x16xf32>
      %582 = vector.shape_cast %581 : vector<1x8x16xf32> to vector<8x16xf32>
      %583 = vector.broadcast %30 : f32 to vector<8x16xf32>
      %584 = arith.mulf %583, %582 : vector<8x16xf32>
      %585 = arith.addf %576, %584 : vector<8x16xf32>
      %586 = vector.extract_strided_slice %580 {offsets = [1, 0, 0], sizes = [1, 8, 16], strides = [1, 1, 1]} : vector<2x8x16xf32> to vector<1x8x16xf32>
      %587 = vector.shape_cast %586 : vector<1x8x16xf32> to vector<8x16xf32>
      %588 = vector.broadcast %79 : f32 to vector<8x16xf32>
      %589 = arith.mulf %588, %587 : vector<8x16xf32>
      %590 = arith.addf %585, %589 : vector<8x16xf32>
      %c4_i32_181 = arith.constant 4 : i32
      %591 = arith.addi %155, %c4_i32_181 : i32
      %c3_182 = arith.constant 3 : index
      %c0_183 = arith.constant 0 : index
      %592 = arith.index_cast %591 : i32 to index
      %c0_184 = arith.constant 0 : index
      %593 = vector.load %arg5[%c3_182, %c0_183, %592, %c0_184] : memref<7x2x22x16xf32, #tpu.memory_space<vmem>>, vector<1x2x8x16xf32>
      %594 = vector.shape_cast %593 : vector<1x2x8x16xf32> to vector<2x8x16xf32>
      %595 = vector.extract_strided_slice %594 {offsets = [0, 0, 0], sizes = [1, 8, 16], strides = [1, 1, 1]} : vector<2x8x16xf32> to vector<1x8x16xf32>
      %596 = vector.shape_cast %595 : vector<1x8x16xf32> to vector<8x16xf32>
      %597 = vector.broadcast %31 : f32 to vector<8x16xf32>
      %598 = arith.mulf %597, %596 : vector<8x16xf32>
      %599 = arith.addf %590, %598 : vector<8x16xf32>
      %600 = vector.extract_strided_slice %594 {offsets = [1, 0, 0], sizes = [1, 8, 16], strides = [1, 1, 1]} : vector<2x8x16xf32> to vector<1x8x16xf32>
      %601 = vector.shape_cast %600 : vector<1x8x16xf32> to vector<8x16xf32>
      %602 = vector.broadcast %80 : f32 to vector<8x16xf32>
      %603 = arith.mulf %602, %601 : vector<8x16xf32>
      %604 = arith.addf %599, %603 : vector<8x16xf32>
      %c4_i32_185 = arith.constant 4 : i32
      %605 = arith.addi %155, %c4_i32_185 : i32
      %c4_186 = arith.constant 4 : index
      %c0_187 = arith.constant 0 : index
      %606 = arith.index_cast %605 : i32 to index
      %c0_188 = arith.constant 0 : index
      %607 = vector.load %arg5[%c4_186, %c0_187, %606, %c0_188] : memref<7x2x22x16xf32, #tpu.memory_space<vmem>>, vector<1x2x8x16xf32>
      %608 = vector.shape_cast %607 : vector<1x2x8x16xf32> to vector<2x8x16xf32>
      %609 = vector.extract_strided_slice %608 {offsets = [0, 0, 0], sizes = [1, 8, 16], strides = [1, 1, 1]} : vector<2x8x16xf32> to vector<1x8x16xf32>
      %610 = vector.shape_cast %609 : vector<1x8x16xf32> to vector<8x16xf32>
      %611 = vector.broadcast %32 : f32 to vector<8x16xf32>
      %612 = arith.mulf %611, %610 : vector<8x16xf32>
      %613 = arith.addf %604, %612 : vector<8x16xf32>
      %614 = vector.extract_strided_slice %608 {offsets = [1, 0, 0], sizes = [1, 8, 16], strides = [1, 1, 1]} : vector<2x8x16xf32> to vector<1x8x16xf32>
      %615 = vector.shape_cast %614 : vector<1x8x16xf32> to vector<8x16xf32>
      %616 = vector.broadcast %81 : f32 to vector<8x16xf32>
      %617 = arith.mulf %616, %615 : vector<8x16xf32>
      %618 = arith.addf %613, %617 : vector<8x16xf32>
      %c4_i32_189 = arith.constant 4 : i32
      %619 = arith.addi %155, %c4_i32_189 : i32
      %c5_190 = arith.constant 5 : index
      %c0_191 = arith.constant 0 : index
      %620 = arith.index_cast %619 : i32 to index
      %c0_192 = arith.constant 0 : index
      %621 = vector.load %arg5[%c5_190, %c0_191, %620, %c0_192] : memref<7x2x22x16xf32, #tpu.memory_space<vmem>>, vector<1x2x8x16xf32>
      %622 = vector.shape_cast %621 : vector<1x2x8x16xf32> to vector<2x8x16xf32>
      %623 = vector.extract_strided_slice %622 {offsets = [0, 0, 0], sizes = [1, 8, 16], strides = [1, 1, 1]} : vector<2x8x16xf32> to vector<1x8x16xf32>
      %624 = vector.shape_cast %623 : vector<1x8x16xf32> to vector<8x16xf32>
      %625 = vector.broadcast %33 : f32 to vector<8x16xf32>
      %626 = arith.mulf %625, %624 : vector<8x16xf32>
      %627 = arith.addf %618, %626 : vector<8x16xf32>
      %628 = vector.extract_strided_slice %622 {offsets = [1, 0, 0], sizes = [1, 8, 16], strides = [1, 1, 1]} : vector<2x8x16xf32> to vector<1x8x16xf32>
      %629 = vector.shape_cast %628 : vector<1x8x16xf32> to vector<8x16xf32>
      %630 = vector.broadcast %82 : f32 to vector<8x16xf32>
      %631 = arith.mulf %630, %629 : vector<8x16xf32>
      %632 = arith.addf %627, %631 : vector<8x16xf32>
      %c4_i32_193 = arith.constant 4 : i32
      %633 = arith.addi %155, %c4_i32_193 : i32
      %c6_194 = arith.constant 6 : index
      %c0_195 = arith.constant 0 : index
      %634 = arith.index_cast %633 : i32 to index
      %c0_196 = arith.constant 0 : index
      %635 = vector.load %arg5[%c6_194, %c0_195, %634, %c0_196] : memref<7x2x22x16xf32, #tpu.memory_space<vmem>>, vector<1x2x8x16xf32>
      %636 = vector.shape_cast %635 : vector<1x2x8x16xf32> to vector<2x8x16xf32>
      %637 = vector.extract_strided_slice %636 {offsets = [0, 0, 0], sizes = [1, 8, 16], strides = [1, 1, 1]} : vector<2x8x16xf32> to vector<1x8x16xf32>
      %638 = vector.shape_cast %637 : vector<1x8x16xf32> to vector<8x16xf32>
      %639 = vector.broadcast %34 : f32 to vector<8x16xf32>
      %640 = arith.mulf %639, %638 : vector<8x16xf32>
      %641 = arith.addf %632, %640 : vector<8x16xf32>
      %642 = vector.extract_strided_slice %636 {offsets = [1, 0, 0], sizes = [1, 8, 16], strides = [1, 1, 1]} : vector<2x8x16xf32> to vector<1x8x16xf32>
      %643 = vector.shape_cast %642 : vector<1x8x16xf32> to vector<8x16xf32>
      %644 = vector.broadcast %83 : f32 to vector<8x16xf32>
      %645 = arith.mulf %644, %643 : vector<8x16xf32>
      %646 = arith.addf %641, %645 : vector<8x16xf32>
      %c5_i32 = arith.constant 5 : i32
      %647 = arith.addi %155, %c5_i32 : i32
      %c0_197 = arith.constant 0 : index
      %c0_198 = arith.constant 0 : index
      %648 = arith.index_cast %647 : i32 to index
      %c0_199 = arith.constant 0 : index
      %649 = vector.load %arg5[%c0_197, %c0_198, %648, %c0_199] : memref<7x2x22x16xf32, #tpu.memory_space<vmem>>, vector<1x2x8x16xf32>
      %650 = vector.shape_cast %649 : vector<1x2x8x16xf32> to vector<2x8x16xf32>
      %651 = vector.extract_strided_slice %650 {offsets = [0, 0, 0], sizes = [1, 8, 16], strides = [1, 1, 1]} : vector<2x8x16xf32> to vector<1x8x16xf32>
      %652 = vector.shape_cast %651 : vector<1x8x16xf32> to vector<8x16xf32>
      %653 = vector.broadcast %35 : f32 to vector<8x16xf32>
      %654 = arith.mulf %653, %652 : vector<8x16xf32>
      %655 = arith.addf %646, %654 : vector<8x16xf32>
      %656 = vector.extract_strided_slice %650 {offsets = [1, 0, 0], sizes = [1, 8, 16], strides = [1, 1, 1]} : vector<2x8x16xf32> to vector<1x8x16xf32>
      %657 = vector.shape_cast %656 : vector<1x8x16xf32> to vector<8x16xf32>
      %658 = vector.broadcast %84 : f32 to vector<8x16xf32>
      %659 = arith.mulf %658, %657 : vector<8x16xf32>
      %660 = arith.addf %655, %659 : vector<8x16xf32>
      %c5_i32_200 = arith.constant 5 : i32
      %661 = arith.addi %155, %c5_i32_200 : i32
      %c1_201 = arith.constant 1 : index
      %c0_202 = arith.constant 0 : index
      %662 = arith.index_cast %661 : i32 to index
      %c0_203 = arith.constant 0 : index
      %663 = vector.load %arg5[%c1_201, %c0_202, %662, %c0_203] : memref<7x2x22x16xf32, #tpu.memory_space<vmem>>, vector<1x2x8x16xf32>
      %664 = vector.shape_cast %663 : vector<1x2x8x16xf32> to vector<2x8x16xf32>
      %665 = vector.extract_strided_slice %664 {offsets = [0, 0, 0], sizes = [1, 8, 16], strides = [1, 1, 1]} : vector<2x8x16xf32> to vector<1x8x16xf32>
      %666 = vector.shape_cast %665 : vector<1x8x16xf32> to vector<8x16xf32>
      %667 = vector.broadcast %36 : f32 to vector<8x16xf32>
      %668 = arith.mulf %667, %666 : vector<8x16xf32>
      %669 = arith.addf %660, %668 : vector<8x16xf32>
      %670 = vector.extract_strided_slice %664 {offsets = [1, 0, 0], sizes = [1, 8, 16], strides = [1, 1, 1]} : vector<2x8x16xf32> to vector<1x8x16xf32>
      %671 = vector.shape_cast %670 : vector<1x8x16xf32> to vector<8x16xf32>
      %672 = vector.broadcast %85 : f32 to vector<8x16xf32>
      %673 = arith.mulf %672, %671 : vector<8x16xf32>
      %674 = arith.addf %669, %673 : vector<8x16xf32>
      %c5_i32_204 = arith.constant 5 : i32
      %675 = arith.addi %155, %c5_i32_204 : i32
      %c2_205 = arith.constant 2 : index
      %c0_206 = arith.constant 0 : index
      %676 = arith.index_cast %675 : i32 to index
      %c0_207 = arith.constant 0 : index
      %677 = vector.load %arg5[%c2_205, %c0_206, %676, %c0_207] : memref<7x2x22x16xf32, #tpu.memory_space<vmem>>, vector<1x2x8x16xf32>
      %678 = vector.shape_cast %677 : vector<1x2x8x16xf32> to vector<2x8x16xf32>
      %679 = vector.extract_strided_slice %678 {offsets = [0, 0, 0], sizes = [1, 8, 16], strides = [1, 1, 1]} : vector<2x8x16xf32> to vector<1x8x16xf32>
      %680 = vector.shape_cast %679 : vector<1x8x16xf32> to vector<8x16xf32>
      %681 = vector.broadcast %37 : f32 to vector<8x16xf32>
      %682 = arith.mulf %681, %680 : vector<8x16xf32>
      %683 = arith.addf %674, %682 : vector<8x16xf32>
      %684 = vector.extract_strided_slice %678 {offsets = [1, 0, 0], sizes = [1, 8, 16], strides = [1, 1, 1]} : vector<2x8x16xf32> to vector<1x8x16xf32>
      %685 = vector.shape_cast %684 : vector<1x8x16xf32> to vector<8x16xf32>
      %686 = vector.broadcast %86 : f32 to vector<8x16xf32>
      %687 = arith.mulf %686, %685 : vector<8x16xf32>
      %688 = arith.addf %683, %687 : vector<8x16xf32>
      %c5_i32_208 = arith.constant 5 : i32
      %689 = arith.addi %155, %c5_i32_208 : i32
      %c3_209 = arith.constant 3 : index
      %c0_210 = arith.constant 0 : index
      %690 = arith.index_cast %689 : i32 to index
      %c0_211 = arith.constant 0 : index
      %691 = vector.load %arg5[%c3_209, %c0_210, %690, %c0_211] : memref<7x2x22x16xf32, #tpu.memory_space<vmem>>, vector<1x2x8x16xf32>
      %692 = vector.shape_cast %691 : vector<1x2x8x16xf32> to vector<2x8x16xf32>
      %693 = vector.extract_strided_slice %692 {offsets = [0, 0, 0], sizes = [1, 8, 16], strides = [1, 1, 1]} : vector<2x8x16xf32> to vector<1x8x16xf32>
      %694 = vector.shape_cast %693 : vector<1x8x16xf32> to vector<8x16xf32>
      %695 = vector.broadcast %38 : f32 to vector<8x16xf32>
      %696 = arith.mulf %695, %694 : vector<8x16xf32>
      %697 = arith.addf %688, %696 : vector<8x16xf32>
      %698 = vector.extract_strided_slice %692 {offsets = [1, 0, 0], sizes = [1, 8, 16], strides = [1, 1, 1]} : vector<2x8x16xf32> to vector<1x8x16xf32>
      %699 = vector.shape_cast %698 : vector<1x8x16xf32> to vector<8x16xf32>
      %700 = vector.broadcast %87 : f32 to vector<8x16xf32>
      %701 = arith.mulf %700, %699 : vector<8x16xf32>
      %702 = arith.addf %697, %701 : vector<8x16xf32>
      %c5_i32_212 = arith.constant 5 : i32
      %703 = arith.addi %155, %c5_i32_212 : i32
      %c4_213 = arith.constant 4 : index
      %c0_214 = arith.constant 0 : index
      %704 = arith.index_cast %703 : i32 to index
      %c0_215 = arith.constant 0 : index
      %705 = vector.load %arg5[%c4_213, %c0_214, %704, %c0_215] : memref<7x2x22x16xf32, #tpu.memory_space<vmem>>, vector<1x2x8x16xf32>
      %706 = vector.shape_cast %705 : vector<1x2x8x16xf32> to vector<2x8x16xf32>
      %707 = vector.extract_strided_slice %706 {offsets = [0, 0, 0], sizes = [1, 8, 16], strides = [1, 1, 1]} : vector<2x8x16xf32> to vector<1x8x16xf32>
      %708 = vector.shape_cast %707 : vector<1x8x16xf32> to vector<8x16xf32>
      %709 = vector.broadcast %39 : f32 to vector<8x16xf32>
      %710 = arith.mulf %709, %708 : vector<8x16xf32>
      %711 = arith.addf %702, %710 : vector<8x16xf32>
      %712 = vector.extract_strided_slice %706 {offsets = [1, 0, 0], sizes = [1, 8, 16], strides = [1, 1, 1]} : vector<2x8x16xf32> to vector<1x8x16xf32>
      %713 = vector.shape_cast %712 : vector<1x8x16xf32> to vector<8x16xf32>
      %714 = vector.broadcast %88 : f32 to vector<8x16xf32>
      %715 = arith.mulf %714, %713 : vector<8x16xf32>
      %716 = arith.addf %711, %715 : vector<8x16xf32>
      %c5_i32_216 = arith.constant 5 : i32
      %717 = arith.addi %155, %c5_i32_216 : i32
      %c5_217 = arith.constant 5 : index
      %c0_218 = arith.constant 0 : index
      %718 = arith.index_cast %717 : i32 to index
      %c0_219 = arith.constant 0 : index
      %719 = vector.load %arg5[%c5_217, %c0_218, %718, %c0_219] : memref<7x2x22x16xf32, #tpu.memory_space<vmem>>, vector<1x2x8x16xf32>
      %720 = vector.shape_cast %719 : vector<1x2x8x16xf32> to vector<2x8x16xf32>
      %721 = vector.extract_strided_slice %720 {offsets = [0, 0, 0], sizes = [1, 8, 16], strides = [1, 1, 1]} : vector<2x8x16xf32> to vector<1x8x16xf32>
      %722 = vector.shape_cast %721 : vector<1x8x16xf32> to vector<8x16xf32>
      %723 = vector.broadcast %40 : f32 to vector<8x16xf32>
      %724 = arith.mulf %723, %722 : vector<8x16xf32>
      %725 = arith.addf %716, %724 : vector<8x16xf32>
      %726 = vector.extract_strided_slice %720 {offsets = [1, 0, 0], sizes = [1, 8, 16], strides = [1, 1, 1]} : vector<2x8x16xf32> to vector<1x8x16xf32>
      %727 = vector.shape_cast %726 : vector<1x8x16xf32> to vector<8x16xf32>
      %728 = vector.broadcast %89 : f32 to vector<8x16xf32>
      %729 = arith.mulf %728, %727 : vector<8x16xf32>
      %730 = arith.addf %725, %729 : vector<8x16xf32>
      %c5_i32_220 = arith.constant 5 : i32
      %731 = arith.addi %155, %c5_i32_220 : i32
      %c6_221 = arith.constant 6 : index
      %c0_222 = arith.constant 0 : index
      %732 = arith.index_cast %731 : i32 to index
      %c0_223 = arith.constant 0 : index
      %733 = vector.load %arg5[%c6_221, %c0_222, %732, %c0_223] : memref<7x2x22x16xf32, #tpu.memory_space<vmem>>, vector<1x2x8x16xf32>
      %734 = vector.shape_cast %733 : vector<1x2x8x16xf32> to vector<2x8x16xf32>
      %735 = vector.extract_strided_slice %734 {offsets = [0, 0, 0], sizes = [1, 8, 16], strides = [1, 1, 1]} : vector<2x8x16xf32> to vector<1x8x16xf32>
      %736 = vector.shape_cast %735 : vector<1x8x16xf32> to vector<8x16xf32>
      %737 = vector.broadcast %41 : f32 to vector<8x16xf32>
      %738 = arith.mulf %737, %736 : vector<8x16xf32>
      %739 = arith.addf %730, %738 : vector<8x16xf32>
      %740 = vector.extract_strided_slice %734 {offsets = [1, 0, 0], sizes = [1, 8, 16], strides = [1, 1, 1]} : vector<2x8x16xf32> to vector<1x8x16xf32>
      %741 = vector.shape_cast %740 : vector<1x8x16xf32> to vector<8x16xf32>
      %742 = vector.broadcast %90 : f32 to vector<8x16xf32>
      %743 = arith.mulf %742, %741 : vector<8x16xf32>
      %744 = arith.addf %739, %743 : vector<8x16xf32>
      %c6_i32 = arith.constant 6 : i32
      %745 = arith.addi %155, %c6_i32 : i32
      %c0_224 = arith.constant 0 : index
      %c0_225 = arith.constant 0 : index
      %746 = arith.index_cast %745 : i32 to index
      %c0_226 = arith.constant 0 : index
      %747 = vector.load %arg5[%c0_224, %c0_225, %746, %c0_226] : memref<7x2x22x16xf32, #tpu.memory_space<vmem>>, vector<1x2x8x16xf32>
      %748 = vector.shape_cast %747 : vector<1x2x8x16xf32> to vector<2x8x16xf32>
      %749 = vector.extract_strided_slice %748 {offsets = [0, 0, 0], sizes = [1, 8, 16], strides = [1, 1, 1]} : vector<2x8x16xf32> to vector<1x8x16xf32>
      %750 = vector.shape_cast %749 : vector<1x8x16xf32> to vector<8x16xf32>
      %751 = vector.broadcast %42 : f32 to vector<8x16xf32>
      %752 = arith.mulf %751, %750 : vector<8x16xf32>
      %753 = arith.addf %744, %752 : vector<8x16xf32>
      %754 = vector.extract_strided_slice %748 {offsets = [1, 0, 0], sizes = [1, 8, 16], strides = [1, 1, 1]} : vector<2x8x16xf32> to vector<1x8x16xf32>
      %755 = vector.shape_cast %754 : vector<1x8x16xf32> to vector<8x16xf32>
      %756 = vector.broadcast %91 : f32 to vector<8x16xf32>
      %757 = arith.mulf %756, %755 : vector<8x16xf32>
      %758 = arith.addf %753, %757 : vector<8x16xf32>
      %c6_i32_227 = arith.constant 6 : i32
      %759 = arith.addi %155, %c6_i32_227 : i32
      %c1_228 = arith.constant 1 : index
      %c0_229 = arith.constant 0 : index
      %760 = arith.index_cast %759 : i32 to index
      %c0_230 = arith.constant 0 : index
      %761 = vector.load %arg5[%c1_228, %c0_229, %760, %c0_230] : memref<7x2x22x16xf32, #tpu.memory_space<vmem>>, vector<1x2x8x16xf32>
      %762 = vector.shape_cast %761 : vector<1x2x8x16xf32> to vector<2x8x16xf32>
      %763 = vector.extract_strided_slice %762 {offsets = [0, 0, 0], sizes = [1, 8, 16], strides = [1, 1, 1]} : vector<2x8x16xf32> to vector<1x8x16xf32>
      %764 = vector.shape_cast %763 : vector<1x8x16xf32> to vector<8x16xf32>
      %765 = vector.broadcast %43 : f32 to vector<8x16xf32>
      %766 = arith.mulf %765, %764 : vector<8x16xf32>
      %767 = arith.addf %758, %766 : vector<8x16xf32>
      %768 = vector.extract_strided_slice %762 {offsets = [1, 0, 0], sizes = [1, 8, 16], strides = [1, 1, 1]} : vector<2x8x16xf32> to vector<1x8x16xf32>
      %769 = vector.shape_cast %768 : vector<1x8x16xf32> to vector<8x16xf32>
      %770 = vector.broadcast %92 : f32 to vector<8x16xf32>
      %771 = arith.mulf %770, %769 : vector<8x16xf32>
      %772 = arith.addf %767, %771 : vector<8x16xf32>
      %c6_i32_231 = arith.constant 6 : i32
      %773 = arith.addi %155, %c6_i32_231 : i32
      %c2_232 = arith.constant 2 : index
      %c0_233 = arith.constant 0 : index
      %774 = arith.index_cast %773 : i32 to index
      %c0_234 = arith.constant 0 : index
      %775 = vector.load %arg5[%c2_232, %c0_233, %774, %c0_234] : memref<7x2x22x16xf32, #tpu.memory_space<vmem>>, vector<1x2x8x16xf32>
      %776 = vector.shape_cast %775 : vector<1x2x8x16xf32> to vector<2x8x16xf32>
      %777 = vector.extract_strided_slice %776 {offsets = [0, 0, 0], sizes = [1, 8, 16], strides = [1, 1, 1]} : vector<2x8x16xf32> to vector<1x8x16xf32>
      %778 = vector.shape_cast %777 : vector<1x8x16xf32> to vector<8x16xf32>
      %779 = vector.broadcast %44 : f32 to vector<8x16xf32>
      %780 = arith.mulf %779, %778 : vector<8x16xf32>
      %781 = arith.addf %772, %780 : vector<8x16xf32>
      %782 = vector.extract_strided_slice %776 {offsets = [1, 0, 0], sizes = [1, 8, 16], strides = [1, 1, 1]} : vector<2x8x16xf32> to vector<1x8x16xf32>
      %783 = vector.shape_cast %782 : vector<1x8x16xf32> to vector<8x16xf32>
      %784 = vector.broadcast %93 : f32 to vector<8x16xf32>
      %785 = arith.mulf %784, %783 : vector<8x16xf32>
      %786 = arith.addf %781, %785 : vector<8x16xf32>
      %c6_i32_235 = arith.constant 6 : i32
      %787 = arith.addi %155, %c6_i32_235 : i32
      %c3_236 = arith.constant 3 : index
      %c0_237 = arith.constant 0 : index
      %788 = arith.index_cast %787 : i32 to index
      %c0_238 = arith.constant 0 : index
      %789 = vector.load %arg5[%c3_236, %c0_237, %788, %c0_238] : memref<7x2x22x16xf32, #tpu.memory_space<vmem>>, vector<1x2x8x16xf32>
      %790 = vector.shape_cast %789 : vector<1x2x8x16xf32> to vector<2x8x16xf32>
      %791 = vector.extract_strided_slice %790 {offsets = [0, 0, 0], sizes = [1, 8, 16], strides = [1, 1, 1]} : vector<2x8x16xf32> to vector<1x8x16xf32>
      %792 = vector.shape_cast %791 : vector<1x8x16xf32> to vector<8x16xf32>
      %793 = vector.broadcast %45 : f32 to vector<8x16xf32>
      %794 = arith.mulf %793, %792 : vector<8x16xf32>
      %795 = arith.addf %786, %794 : vector<8x16xf32>
      %796 = vector.extract_strided_slice %790 {offsets = [1, 0, 0], sizes = [1, 8, 16], strides = [1, 1, 1]} : vector<2x8x16xf32> to vector<1x8x16xf32>
      %797 = vector.shape_cast %796 : vector<1x8x16xf32> to vector<8x16xf32>
      %798 = vector.broadcast %94 : f32 to vector<8x16xf32>
      %799 = arith.mulf %798, %797 : vector<8x16xf32>
      %800 = arith.addf %795, %799 : vector<8x16xf32>
      %c6_i32_239 = arith.constant 6 : i32
      %801 = arith.addi %155, %c6_i32_239 : i32
      %c4_240 = arith.constant 4 : index
      %c0_241 = arith.constant 0 : index
      %802 = arith.index_cast %801 : i32 to index
      %c0_242 = arith.constant 0 : index
      %803 = vector.load %arg5[%c4_240, %c0_241, %802, %c0_242] : memref<7x2x22x16xf32, #tpu.memory_space<vmem>>, vector<1x2x8x16xf32>
      %804 = vector.shape_cast %803 : vector<1x2x8x16xf32> to vector<2x8x16xf32>
      %805 = vector.extract_strided_slice %804 {offsets = [0, 0, 0], sizes = [1, 8, 16], strides = [1, 1, 1]} : vector<2x8x16xf32> to vector<1x8x16xf32>
      %806 = vector.shape_cast %805 : vector<1x8x16xf32> to vector<8x16xf32>
      %807 = vector.broadcast %46 : f32 to vector<8x16xf32>
      %808 = arith.mulf %807, %806 : vector<8x16xf32>
      %809 = arith.addf %800, %808 : vector<8x16xf32>
      %810 = vector.extract_strided_slice %804 {offsets = [1, 0, 0], sizes = [1, 8, 16], strides = [1, 1, 1]} : vector<2x8x16xf32> to vector<1x8x16xf32>
      %811 = vector.shape_cast %810 : vector<1x8x16xf32> to vector<8x16xf32>
      %812 = vector.broadcast %95 : f32 to vector<8x16xf32>
      %813 = arith.mulf %812, %811 : vector<8x16xf32>
      %814 = arith.addf %809, %813 : vector<8x16xf32>
      %c6_i32_243 = arith.constant 6 : i32
      %815 = arith.addi %155, %c6_i32_243 : i32
      %c5_244 = arith.constant 5 : index
      %c0_245 = arith.constant 0 : index
      %816 = arith.index_cast %815 : i32 to index
      %c0_246 = arith.constant 0 : index
      %817 = vector.load %arg5[%c5_244, %c0_245, %816, %c0_246] : memref<7x2x22x16xf32, #tpu.memory_space<vmem>>, vector<1x2x8x16xf32>
      %818 = vector.shape_cast %817 : vector<1x2x8x16xf32> to vector<2x8x16xf32>
      %819 = vector.extract_strided_slice %818 {offsets = [0, 0, 0], sizes = [1, 8, 16], strides = [1, 1, 1]} : vector<2x8x16xf32> to vector<1x8x16xf32>
      %820 = vector.shape_cast %819 : vector<1x8x16xf32> to vector<8x16xf32>
      %821 = vector.broadcast %47 : f32 to vector<8x16xf32>
      %822 = arith.mulf %821, %820 : vector<8x16xf32>
      %823 = arith.addf %814, %822 : vector<8x16xf32>
      %824 = vector.extract_strided_slice %818 {offsets = [1, 0, 0], sizes = [1, 8, 16], strides = [1, 1, 1]} : vector<2x8x16xf32> to vector<1x8x16xf32>
      %825 = vector.shape_cast %824 : vector<1x8x16xf32> to vector<8x16xf32>
      %826 = vector.broadcast %96 : f32 to vector<8x16xf32>
      %827 = arith.mulf %826, %825 : vector<8x16xf32>
      %828 = arith.addf %823, %827 : vector<8x16xf32>
      %c6_i32_247 = arith.constant 6 : i32
      %829 = arith.addi %155, %c6_i32_247 : i32
      %c6_248 = arith.constant 6 : index
      %c0_249 = arith.constant 0 : index
      %830 = arith.index_cast %829 : i32 to index
      %c0_250 = arith.constant 0 : index
      %831 = vector.load %arg5[%c6_248, %c0_249, %830, %c0_250] : memref<7x2x22x16xf32, #tpu.memory_space<vmem>>, vector<1x2x8x16xf32>
      %832 = vector.shape_cast %831 : vector<1x2x8x16xf32> to vector<2x8x16xf32>
      %833 = vector.extract_strided_slice %832 {offsets = [0, 0, 0], sizes = [1, 8, 16], strides = [1, 1, 1]} : vector<2x8x16xf32> to vector<1x8x16xf32>
      %834 = vector.shape_cast %833 : vector<1x8x16xf32> to vector<8x16xf32>
      %835 = vector.broadcast %48 : f32 to vector<8x16xf32>
      %836 = arith.mulf %835, %834 : vector<8x16xf32>
      %837 = arith.addf %828, %836 : vector<8x16xf32>
      %838 = vector.extract_strided_slice %832 {offsets = [1, 0, 0], sizes = [1, 8, 16], strides = [1, 1, 1]} : vector<2x8x16xf32> to vector<1x8x16xf32>
      %839 = vector.shape_cast %838 : vector<1x8x16xf32> to vector<8x16xf32>
      %840 = vector.broadcast %97 : f32 to vector<8x16xf32>
      %841 = arith.mulf %840, %839 : vector<8x16xf32>
      %842 = arith.addf %837, %841 : vector<8x16xf32>
      %843 = vector.broadcast %98 : f32 to vector<8x16xf32>
      %844 = arith.mulf %842, %843 : vector<8x16xf32>
      %845 = vector.broadcast %99 : f32 to vector<8x16xf32>
      %846 = arith.addf %844, %845 : vector<8x16xf32>
      %cst_251 = arith.constant 0.000000e+00 : f32
      %847 = vector.broadcast %cst_251 : f32 to vector<8x16xf32>
      %848 = arith.subf %847, %846 : vector<8x16xf32>
      %849 = math.exp %848 : vector<8x16xf32>
      %cst_252 = arith.constant 1.000000e+00 : f32
      %850 = vector.broadcast %cst_252 : f32 to vector<8x16xf32>
      %851 = arith.addf %850, %849 : vector<8x16xf32>
      %cst_253 = arith.constant 1.000000e+00 : f32
      %852 = vector.broadcast %cst_253 : f32 to vector<8x16xf32>
      %853 = arith.divf %852, %851 : vector<8x16xf32>
      %c0_254 = arith.constant 0 : index
      %c0_255 = arith.constant 0 : index
      %854 = arith.index_cast %155 : i32 to index
      %c0_256 = arith.constant 0 : index
      %855 = vector.load %arg1[%c0_254, %c0_255, %854, %c0_256] : memref<1x4x16x16xf32, #tpu.memory_space<vmem>>, vector<1x4x8x16xf32>
      %856 = vector.shape_cast %855 : vector<1x4x8x16xf32> to vector<4x8x16xf32>
      %857 = vector.shape_cast %853 : vector<8x16xf32> to vector<1x8x16xf32>
      %858 = vector.broadcast %857 : vector<1x8x16xf32> to vector<4x8x16xf32>
      %859 = arith.mulf %858, %856 : vector<4x8x16xf32>
      %c0_257 = arith.constant 0 : index
      %c0_258 = arith.constant 0 : index
      %860 = arith.index_cast %155 : i32 to index
      %c0_259 = arith.constant 0 : index
      %861 = vector.load %arg3[%c0_257, %c0_258, %860, %c0_259] : memref<1x4x16x16xf32, #tpu.memory_space<vmem>>, vector<1x4x8x16xf32>
      %862 = vector.shape_cast %861 : vector<1x4x8x16xf32> to vector<4x8x16xf32>
      %863 = vector.shape_cast %859 : vector<4x8x16xf32> to vector<1x4x8x16xf32>
      tpu.vector_store %arg3[%c0_257, %c0_258, %860, %c0_259], %863 {strides = array<i32>} : memref<1x4x16x16xf32, #tpu.memory_space<vmem>>, vector<1x4x8x16xf32>,
    }
    %c2_i32_57 = arith.constant 2 : i32
    return
  }
  func.func @transform_0(%arg0: i32) -> (i32, i32, i32, i32) {
    %c0_i32 = arith.constant 0 : i32
    %c0_i32_0 = arith.constant 0 : i32
    %c0_i32_1 = arith.constant 0 : i32
    %c0_i32_2 = arith.constant 0 : i32
    return %arg0, %c0_i32, %c0_i32_0, %c0_i32_1 : i32, i32, i32, i32
  }
  func.func @transform_1(%arg0: i32) -> i32 {
    %c0_i32 = arith.constant 0 : i32
    %c0_i32_0 = arith.constant 0 : i32
    return %c0_i32 : i32
  }
  func.func @transform_2(%arg0: i32) -> (i32, i32, i32, i32) {
    %c0_i32 = arith.constant 0 : i32
    %c0_i32_0 = arith.constant 0 : i32
    %c0_i32_1 = arith.constant 0 : i32
    %c0_i32_2 = arith.constant 0 : i32
    return %arg0, %c0_i32, %c0_i32_0, %c0_i32_1 : i32, i32, i32, i32
  }
}

</mosaic_0001>

<llo_original>
// kernel: tpu_custom_call.1
$region0: #{tpu_custom_call.1}
  #allocation0 [shape = 'u32[]', space=smem, size = 0x4, offset = 0x4, fixed_abs, tag = 'smem constant byte address 0x4 - core index']
  #allocation1 [shape = 'u32[144,128]{1,0:T(1,128)}', space=vmem, size = 0x12000, scoped, tag = 'internal scratch']
  #allocation2 [shape = 'f32[2,22,22]{2,1,0:T(8,128)}', space=vmem, size = 0x6000, scoped, tag = 'scratch operand']
  #allocation3 [shape = 'f32[7,2,22,16]{3,2,1,0:T(8,128)}', space=vmem, size = 0x2a000, scoped, tag = 'scratch operand']
  %s0 = inlined_call_operand.hbm [shape: f32[2,4,16,16], index: 0, kind: input, shape index: {}]
  %s1 = inlined_call_operand.vmem [shape: f32[100], index: 1, kind: input, shape index: {}]
  %s2 = inlined_call_operand.hbm [shape: f32[2,4,16,16], index: 2, kind: output, shape index: {}]
  %s3 = sld [smem:[#allocation0]]
  $region56: #{tpu_custom_call.1} parent=0
    _
  %s5 = ssub.s32 1, %s3
  %s6 = scalar_select 0, %s5, %s3
  $region1: #{tpu_custom_call.1} parent=0
    #allocation4 [shape = 'u8[65536]{0}', space=vmem, size = 0x10000, scoped, tag = 'input window, operand 0']
    #allocation5 [shape = 's32[2]{0}', space=sflag, size = 0x8, scoped, tag = 'scoped memory for tpu_custom_call.1']
    #allocation6 [shape = 's32[2]{0}', space=sflag, size = 0x8, scoped, tag = 'scoped memory for tpu_custom_call.1']
    #allocation7 [shape = 's32[2]{0}', space=sflag, size = 0x8, scoped, tag = 'scoped memory for tpu_custom_call.1']
    #allocation8 [shape = 'u8[512]{0}', space=smem, size = 0x200, scoped, tag = 'input window, operand 1, single buffered']
    #allocation9 [shape = 'u8[65536]{0}', space=vmem, size = 0x10000, scoped, tag = 'output window, operand 0']
    %7 = vsyncpa [#allocation5], 0
    %s8 = scalar_lea.sflag [#allocation5], 1
    %9 = vsyncpa %s8, 0
    %10 = vsyncpa [#allocation7], 0
    %11 = vsyncpa [#allocation6], 0
    %s12 = scalar_lea.sflag [#allocation6], 1
    %13 = vsyncpa %s12, 0
    loop: start=0, step=1, limit=4
    $region2: #{tpu_custom_call.1} parent=1 // loop_pre_header
      _
    $region3: #{tpu_custom_call.1} parent=1 // loop_header
      %s15 = sphi 0, %s19
      %p16 = scmp.ge.s32.totalorder %s15, 4
      %s25 = sphi 0, %s27
      %s28 = sphi 0, %s25
      %s29 = sphi 0, %s28
      %s45 = sphi 0, %s29
      %s49 = sphi 0, %s49
      %s51 = sphi 0, %s49
      %s52 = sphi 0, %s51
      %s66 = sphi 0, %s52
      %s72 = sphi 0, %s74
      %s75 = sphi 0, %s72
      %s76 = sphi 0, %s75
      %s92 = sphi 0, %s76
    $region4: #{tpu_custom_call.1} parent=1 // loop_header_branch
      %18 = sbr.rel (%p16) target = $region8
    $region5: #{tpu_custom_call.1} parent=1 // loop_body
      %s20 = ssub.s32 %s15, 1
      %s21 = ssub.s32 %s15, 2
      %s22 = sadd.s32 %s15, 1
      %s23 = ssub.s32 %s15, %s22
      %p24 = scmp.eq.s32.totalorder %s23, 0
      %s26 = sadd.s32 %s25, 1
      %s27 = scalar_select %p24, %s25, %s26
      %p30 = pneg %p24
      %p31 = scmp.eq.s32.totalorder %s15, 1
      %p32 = por %p30, %p31
      %p33 = scmp.ne.s32.totalorder %s25, %s28
      %p34 = scmp.eq.s32.totalorder %s15, 0
      %p35 = por %p33, %p34
      %p36 = scmp.ne.s32.totalorder %s25, %s28
      %p37 = scmp.eq.s32.totalorder %s20, 1
      %p38 = por %p36, %p37
      %p39 = scmp.ne.s32.totalorder %s28, %s29
      %p40 = scmp.eq.s32.totalorder %s20, 0
      %p41 = por %p39, %p40
      %p42 = scmp.ne.s32.totalorder %s28, %s29
      %p43 = scmp.eq.s32.totalorder %s21, 1
      %p44 = por %p42, %p43
      %p46 = scmp.ne.s32.totalorder %s29, %s45
      %p47 = scmp.eq.s32.totalorder %s21, 0
      %p48 = por %p46, %p47
      %s50 = sadd.s32 %s49, 1
      %p53 = scmp.eq.s32.totalorder %s15, 1
      %p54 = scmp.ne.s32.totalorder %s49, %s51
      %p55 = scmp.eq.s32.totalorder %s15, 0
      %p56 = por %p54, %p55
      %p57 = scmp.ne.s32.totalorder %s49, %s51
      %p58 = scmp.eq.s32.totalorder %s20, 1
      %p59 = por %p57, %p58
      %p60 = scmp.ne.s32.totalorder %s51, %s52
      %p61 = scmp.eq.s32.totalorder %s20, 0
      %p62 = por %p60, %p61
      %p63 = scmp.ne.s32.totalorder %s51, %s52
      %p64 = scmp.eq.s32.totalorder %s21, 1
      %p65 = por %p63, %p64
      %p67 = scmp.ne.s32.totalorder %s52, %s66
      %p68 = scmp.eq.s32.totalorder %s21, 0
      %p69 = por %p67, %p68
      %s70 = ssub.s32 %s15, %s22
      %p71 = scmp.eq.s32.totalorder %s70, 0
      %s73 = sadd.s32 %s72, 1
      %s74 = scalar_select %p71, %s72, %s73
      %p77 = pneg %p71
      %p78 = scmp.eq.s32.totalorder %s15, 1
      %p79 = por %p77, %p78
      %p80 = scmp.ne.s32.totalorder %s72, %s75
      %p81 = scmp.eq.s32.totalorder %s15, 0
      %p82 = por %p80, %p81
      %p83 = scmp.ne.s32.totalorder %s72, %s75
      %p84 = scmp.eq.s32.totalorder %s20, 1
      %p85 = por %p83, %p84
      %p86 = scmp.ne.s32.totalorder %s75, %s76
      %p87 = scmp.eq.s32.totalorder %s20, 0
      %p88 = por %p86, %p87
      %p89 = scmp.ne.s32.totalorder %s75, %s76
      %p90 = scmp.eq.s32.totalorder %s21, 1
      %p91 = por %p89, %p90
      %p93 = scmp.ne.s32.totalorder %s76, %s92
      %p94 = scmp.eq.s32.totalorder %s21, 0
      %p95 = por %p93, %p94
      %p96 = scmp.le.s32.totalorder 1, %s15
      %p97 = scmp.lt.s32.totalorder %s15, 3
      %p98 = pnand %p96, %p97
      %p99 = pneg %p98
      // Predicated region
      $region9: #{tpu_custom_call.1} parent=5 // pred_check
        _
      $region10: #{tpu_custom_call.1} parent=5 // pred_check_branch
        %101 = sbr.rel (%p98) target = $region12
      $region11: #{tpu_custom_call.1} parent=5 // pred_region
        %s102 = ssub.s32 %s15, 1
        // Predicated region
        $region13: #{tpu_custom_call.1} parent=11 // pred_check
          %p103 = pneg %p62
        $region14: #{tpu_custom_call.1} parent=11 // pred_check_branch
          %105 = sbr.rel (%p103) target = $region16
        $region15: #{tpu_custom_call.1} parent=11 // pred_region
          %s107 = ssub.s32 16, 16
          %108 = vsyncadd [#allocation7], %s107
          %s110 = sshll.u32 %s1, 4
          %s111 = int_to_ptr.vmem [resolvable:$true] %s110
          %113 = dma.vmem_to_smem %s111, 16, [#allocation8], [#allocation7]
        $region16: #{tpu_custom_call.1} parent=11 // pred_fallthru
          _
      $region12: #{tpu_custom_call.1} parent=5 // pred_fallthru
        _
      %p114 = scmp.lt.s32.totalorder %s15, 2
      // Predicated region
      $region17: #{tpu_custom_call.1} parent=5 // pred_check
        %p115 = pneg %p114
      $region18: #{tpu_custom_call.1} parent=5 // pred_check_branch
        %117 = sbr.rel (%p115) target = $region20
      $region19: #{tpu_custom_call.1} parent=5 // pred_region
        // Predicated region
        $region21: #{tpu_custom_call.1} parent=19 // pred_check
          %p118 = pneg %p35
        $region22: #{tpu_custom_call.1} parent=19 // pred_check_branch
          %120 = sbr.rel (%p118) target = $region24
        $region23: #{tpu_custom_call.1} parent=19 // pred_region
          %s121 = sand.u32 %s25, 1
          %s122 = scalar_lea.sflag [#allocation5], %s121
          %s123 = sand.u32 %s25, 1
          %s124 = smul.addr %s123, 64
          %s125 = scalar_lea.vmem [#allocation4], %s124
          %s127 = ssub.s32 1024, 1024
          %128 = vsyncadd %s122, %s127
          %s129 = smul.addr %s15, 8
          %s130 = smul.addr %s129, 128
          %s131 = scalar_lea.hbm %s0, %s130
          %s132 = sshll.u32 %s125, 4
          %s133 = int_to_ptr.vmem [resolvable:$true] %s132
          %138 = dma.hbm_to_vmem [thread:$0]  %s131, 1024, %s133, %s122, 128, 128, 8
        $region24: #{tpu_custom_call.1} parent=19 // pred_fallthru
          _
      $region20: #{tpu_custom_call.1} parent=5 // pred_fallthru
        _
      %p139 = scmp.le.s32.totalorder 1, %s15
      %p140 = scmp.lt.s32.totalorder %s15, 3
      %p141 = pnand %p139, %p140
      %p142 = pneg %p141
      // Predicated region
      $region25: #{tpu_custom_call.1} parent=5 // pred_check
        _
      $region26: #{tpu_custom_call.1} parent=5 // pred_check_branch
        %144 = sbr.rel (%p141) target = $region28
      $region27: #{tpu_custom_call.1} parent=5 // pred_region
        %s145 = ssub.s32 %s15, 1
        %s146 = sand.u32 %s28, 1
        %s147 = scalar_lea.sflag [#allocation5], %s146
        %s148 = sand.u32 %s28, 1
        %s149 = smul.addr %s148, 64
        %s150 = scalar_lea.vmem [#allocation4], %s149
        // Predicated region
        $region29: #{tpu_custom_call.1} parent=27 // pred_check
          %p151 = pneg %p41
        $region30: #{tpu_custom_call.1} parent=27 // pred_check_branch
          %153 = sbr.rel (%p151) target = $region32
        $region31: #{tpu_custom_call.1} parent=27 // pred_region
          %154 = dma.done %s147, 1024
        $region32: #{tpu_custom_call.1} parent=27 // pred_fallthru
          _
        // Predicated region
        $region33: #{tpu_custom_call.1} parent=27 // pred_check
          %p155 = pneg %p62
        $region34: #{tpu_custom_call.1} parent=27 // pred_check_branch
          %157 = sbr.rel (%p155) target = $region36
        $region35: #{tpu_custom_call.1} parent=27 // pred_region
          %158 = dma.done [#allocation7], 16
        $region36: #{tpu_custom_call.1} parent=27 // pred_fallthru
          _
        %159 = sfence
        %s160 = sand.u32 %s28, 1
        %s161 = scalar_lea.sflag [#allocation5], %s160
        %s162 = sand.u32 %s28, 1
        %s163 = smul.addr %s162, 64
        %s164 = scalar_lea.vmem [#allocation4], %s163
        %p165 = pneg %p41
        %p166 = pneg %p38
        %p167 = pneg %p62
        %p168 = pneg %p59
        %p169 = pneg %p88
        %p170 = pneg %p85
        %s171 = sand.u32 %s75, 1
        %s172 = scalar_lea.sflag [#allocation6], %s171
        %s173 = sand.u32 %s75, 1
        %s174 = smul.addr %s173, 64
        %s175 = scalar_lea.vmem [#allocation9], %s174
        %s176 = sld [smem:[#allocation8]]
        %s177 = sld [smem:[#allocation8 + $0x1]]
        %s178 = sld [smem:[#allocation8 + $0x2]]
        %s179 = sld [smem:[#allocation8 + $0x3]]
        %s180 = sld [smem:[#allocation8 + $0x4]]
        %s181 = sld [smem:[#allocation8 + $0x5]]
        %s182 = sld [smem:[#allocation8 + $0x6]]
        %s183 = sld [smem:[#allocation8 + $0x7]]
        %s184 = sld [smem:[#allocation8 + $0x8]]
        %s185 = sld [smem:[#allocation8 + $0x9]]
        %s186 = sld [smem:[#allocation8 + $0xa]]
        %s187 = sld [smem:[#allocation8 + $0xb]]
        %s188 = sld [smem:[#allocation8 + $0xc]]
        %s189 = sld [smem:[#allocation8 + $0xd]]
        %s190 = sld [smem:[#allocation8 + $0xe]]
        %s191 = sld [smem:[#allocation8 + $0xf]]
        %s192 = sld [smem:[#allocation8 + $0x10]]
        %s193 = sld [smem:[#allocation8 + $0x11]]
        %s194 = sld [smem:[#allocation8 + $0x12]]
        %s195 = sld [smem:[#allocation8 + $0x13]]
        %s196 = sld [smem:[#allocation8 + $0x14]]
        %s197 = sld [smem:[#allocation8 + $0x15]]
        %s198 = sld [smem:[#allocation8 + $0x16]]
        %s199 = sld [smem:[#allocation8 + $0x17]]
        %s200 = sld [smem:[#allocation8 + $0x18]]
        %s201 = sld [smem:[#allocation8 + $0x19]]
        %s202 = sld [smem:[#allocation8 + $0x1a]]
        %s203 = sld [smem:[#allocation8 + $0x1b]]
        %s204 = sld [smem:[#allocation8 + $0x1c]]
        %s205 = sld [smem:[#allocation8 + $0x1d]]
        %s206 = sld [smem:[#allocation8 + $0x1e]]
        %s207 = sld [smem:[#allocation8 + $0x1f]]
        %s208 = sld [smem:[#allocation8 + $0x20]]
        %s209 = sld [smem:[#allocation8 + $0x21]]
        %s210 = sld [smem:[#allocation8 + $0x22]]
        %s211 = sld [smem:[#allocation8 + $0x23]]
        %s212 = sld [smem:[#allocation8 + $0x24]]
        %s213 = sld [smem:[#allocation8 + $0x25]]
        %s214 = sld [smem:[#allocation8 + $0x26]]
        %s215 = sld [smem:[#allocation8 + $0x27]]
        %s216 = sld [smem:[#allocation8 + $0x28]]
        %s217 = sld [smem:[#allocation8 + $0x29]]
        %s218 = sld [smem:[#allocation8 + $0x2a]]
        %s219 = sld [smem:[#allocation8 + $0x2b]]
        %s220 = sld [smem:[#allocation8 + $0x2c]]
        %s221 = sld [smem:[#allocation8 + $0x2d]]
        %s222 = sld [smem:[#allocation8 + $0x2e]]
        %s223 = sld [smem:[#allocation8 + $0x2f]]
        %s224 = sld [smem:[#allocation8 + $0x30]]
        %s225 = sld [smem:[#allocation8 + $0x31]]
        %s226 = sld [smem:[#allocation8 + $0x32]]
        %s227 = sld [smem:[#allocation8 + $0x33]]
        %s228 = sld [smem:[#allocation8 + $0x34]]
        %s229 = sld [smem:[#allocation8 + $0x35]]
        %s230 = sld [smem:[#allocation8 + $0x36]]
        %s231 = sld [smem:[#allocation8 + $0x37]]
        %s232 = sld [smem:[#allocation8 + $0x38]]
        %s233 = sld [smem:[#allocation8 + $0x39]]
        %s234 = sld [smem:[#allocation8 + $0x3a]]
        %s235 = sld [smem:[#allocation8 + $0x3b]]
        %s236 = sld [smem:[#allocation8 + $0x3c]]
        %s237 = sld [smem:[#allocation8 + $0x3d]]
        %s238 = sld [smem:[#allocation8 + $0x3e]]
        %s239 = sld [smem:[#allocation8 + $0x3f]]
        %s240 = sld [smem:[#allocation8 + $0x40]]
        %s241 = sld [smem:[#allocation8 + $0x41]]
        %s242 = sld [smem:[#allocation8 + $0x42]]
        %s243 = sld [smem:[#allocation8 + $0x43]]
        %s244 = sld [smem:[#allocation8 + $0x44]]
        %s245 = sld [smem:[#allocation8 + $0x45]]
        %s246 = sld [smem:[#allocation8 + $0x46]]
        %s247 = sld [smem:[#allocation8 + $0x47]]
        %s248 = sld [smem:[#allocation8 + $0x48]]
        %s249 = sld [smem:[#allocation8 + $0x49]]
        %s250 = sld [smem:[#allocation8 + $0x4a]]
        %s251 = sld [smem:[#allocation8 + $0x4b]]
        %s252 = sld [smem:[#allocation8 + $0x4c]]
        %s253 = sld [smem:[#allocation8 + $0x4d]]
        %s254 = sld [smem:[#allocation8 + $0x4e]]
        %s255 = sld [smem:[#allocation8 + $0x4f]]
        %s256 = sld [smem:[#allocation8 + $0x50]]
        %s257 = sld [smem:[#allocation8 + $0x51]]
        %s258 = sld [smem:[#allocation8 + $0x52]]
        %s259 = sld [smem:[#allocation8 + $0x53]]
        %s260 = sld [smem:[#allocation8 + $0x54]]
        %s261 = sld [smem:[#allocation8 + $0x55]]
        %s262 = sld [smem:[#allocation8 + $0x56]]
        %s263 = sld [smem:[#allocation8 + $0x57]]
        %s264 = sld [smem:[#allocation8 + $0x58]]
        %s265 = sld [smem:[#allocation8 + $0x59]]
        %s266 = sld [smem:[#allocation8 + $0x5a]]
        %s267 = sld [smem:[#allocation8 + $0x5b]]
        %s268 = sld [smem:[#allocation8 + $0x5c]]
        %s269 = sld [smem:[#allocation8 + $0x5d]]
        %s270 = sld [smem:[#allocation8 + $0x5e]]
        %s271 = sld [smem:[#allocation8 + $0x5f]]
        %s272 = sld [smem:[#allocation8 + $0x60]]
        %s273 = sld [smem:[#allocation8 + $0x61]]
        %s274 = sld [smem:[#allocation8 + $0x62]]
        %s275 = sld [smem:[#allocation8 + $0x63]]
        %v276 = vld [vmem:[%s150] sm:$0xff]
        %v277 = vld [vmem:[%s150 + $0x8] sm:$0xff]
        %s278 = scalar_lea.vmem %s150, 16 [#allocation4]
        %v279 = vld [vmem:[%s278] sm:$0xff]
        %v280 = vld [vmem:[%s278 + $0x8] sm:$0xff]
        %v281 = vmax.f32 %v276, %v279
        %v282 = vmax.f32 %v277, %v280
        %v283 = vadd.f32 %v276, %v279
        %v284 = vadd.f32 %v277, %v280
        %s285 = scalar_lea.vmem %s150, 32 [#allocation4]
        %v286 = vld [vmem:[%s285] sm:$0xff]
        %v287 = vld [vmem:[%s285 + $0x8] sm:$0xff]
        %v288 = vmax.f32 %v281, %v286
        %v289 = vmax.f32 %v282, %v287
        %v290 = vadd.f32 %v283, %v286
        %v291 = vadd.f32 %v284, %v287
        %s292 = scalar_lea.vmem %s150, 48 [#allocation4]
        %v293 = vld [vmem:[%s292] sm:$0xff]
        %v294 = vld [vmem:[%s292 + $0x8] sm:$0xff]
        %v295 = vmax.f32 %v288, %v293
        %v296 = vmax.f32 %v289, %v294
        %v297 = vadd.f32 %v290, %v293
        %v298 = vadd.f32 %v291, %v294
        %vm299 = vcmask 179200
        %300 = vst.msk [vmem:[#allocation2] sm:$0xff] %vm299, 0.0
        %301 = vst.msk [vmem:[#allocation2 + $0x8] sm:$0xff] %vm299, 0.0
        %vm302 = vcmask 177152
        %303 = vst.msk [vmem:[#allocation2 + $0x10] sm:$0x3f] %vm302, 0.0
        %304 = vst.msk [vmem:[#allocation2 + $0x18] sm:$0xff] %vm299, 0.0
        %305 = vst.msk [vmem:[#allocation2 + $0x20] sm:$0xff] %vm299, 0.0
        %306 = vst.msk [vmem:[#allocation2 + $0x28] sm:$0x3f] %vm302, 0.0
        %309 = vrot.lane.b32.xlu0 %v295, 3
        %v310 = vpop.permute.xlu0 %309
        %311 = vrot.lane.b32.xlu0 %v296, 3
        %v312 = vpop.permute.xlu0 %311
        %vm315 = vcmask 154648
        %316 = vst.msk [vmem:[#allocation2 + $0x3] sm:$0xff] %vm315, %v310
        %317 = vst.msk [vmem:[#allocation2 + $0xb] sm:$0xff] %vm315, %v312
        %v318 = vmul.f32 %v297, 0.25
        %v319 = vmul.f32 %v298, 0.25
        %322 = vrot.lane.b32.xlu0 %v318, 3
        %v323 = vpop.permute.xlu0 %322
        %324 = vrot.lane.b32.xlu0 %v319, 3
        %v325 = vpop.permute.xlu0 %324
        %s328 = scalar_lea.vmem [#allocation2], 24
        %329 = vst.msk [vmem:[%s328 + $0x3] sm:$0xff] %vm315, %v323
        %330 = vst.msk [vmem:[%s328 + $0xb] sm:$0xff] %vm315, %v325
        %v331 = vld [vmem:[#allocation2] sm:$0xff]
        %v332 = vld [vmem:[#allocation2 + $0x8] sm:$0xff]
        %v333 = vld [vmem:[#allocation2 + $0x10] sm:$0x3f]
        %v334 = vld [vmem:[#allocation2 + $0x18] sm:$0xff]
        %v335 = vld [vmem:[#allocation2 + $0x20] sm:$0xff]
        %v336 = vld [vmem:[#allocation2 + $0x28] sm:$0x3f]
        %vm337 = vcmask 130048
        %338 = vst.msk [vmem:[#allocation3] sm:$0xff] %vm337, %v331
        %339 = vst.msk [vmem:[#allocation3 + $0x8] sm:$0xff] %vm337, %v332
        %vm340 = vcmask 128000
        %341 = vst.msk [vmem:[#allocation3 + $0x10] sm:$0x3f] %vm340, %v333
        %342 = vst.msk [vmem:[#allocation3 + $0x18] sm:$0xff] %vm337, %v334
        %343 = vst.msk [vmem:[#allocation3 + $0x20] sm:$0xff] %vm337, %v335
        %344 = vst.msk [vmem:[#allocation3 + $0x28] sm:$0x3f] %vm340, %v336
        %351 = vrot.lane.b32.xlu0 %v331, 127
        %v352 = vpop.permute.xlu0 %351
        %353 = vrot.lane.b32.xlu0 %v332, 127
        %v354 = vpop.permute.xlu0 %353
        %355 = vrot.lane.b32.xlu0 %v333, 127
        %v356 = vpop.permute.xlu0 %355
        %357 = vrot.lane.b32.xlu0 %v334, 127
        %v358 = vpop.permute.xlu0 %357
        %359 = vrot.lane.b32.xlu0 %v335, 127
        %v360 = vpop.permute.xlu0 %359
        %361 = vrot.lane.b32.xlu0 %v336, 127
        %v362 = vpop.permute.xlu0 %361
        %s369 = scalar_lea.vmem [#allocation3], 48
        %370 = vst.msk [vmem:[%s369] sm:$0xff] %vm337, %v352
        %371 = vst.msk [vmem:[%s369 + $0x8] sm:$0xff] %vm337, %v354
        %372 = vst.msk [vmem:[%s369 + $0x10] sm:$0x3f] %vm340, %v356
        %373 = vst.msk [vmem:[%s369 + $0x18] sm:$0xff] %vm337, %v358
        %374 = vst.msk [vmem:[%s369 + $0x20] sm:$0xff] %vm337, %v360
        %375 = vst.msk [vmem:[%s369 + $0x28] sm:$0x3f] %vm340, %v362
        %376 = vrot.lane.b32.xlu0 %v331, 126
        %v377 = vpop.permute.xlu0 %376
        %378 = vrot.lane.b32.xlu0 %v332, 126
        %v379 = vpop.permute.xlu0 %378
        %380 = vrot.lane.b32.xlu0 %v333, 126
        %v381 = vpop.permute.xlu0 %380
        %382 = vrot.lane.b32.xlu0 %v334, 126
        %v383 = vpop.permute.xlu0 %382
        %384 = vrot.lane.b32.xlu0 %v335, 126
        %v385 = vpop.permute.xlu0 %384
        %386 = vrot.lane.b32.xlu0 %v336, 126
        %v387 = vpop.permute.xlu0 %386
        %s394 = scalar_lea.vmem [#allocation3], 96
        %395 = vst.msk [vmem:[%s394] sm:$0xff] %vm337, %v377
        %396 = vst.msk [vmem:[%s394 + $0x8] sm:$0xff] %vm337, %v379
        %397 = vst.msk [vmem:[%s394 + $0x10] sm:$0x3f] %vm340, %v381
        %398 = vst.msk [vmem:[%s394 + $0x18] sm:$0xff] %vm337, %v383
        %399 = vst.msk [vmem:[%s394 + $0x20] sm:$0xff] %vm337, %v385
        %400 = vst.msk [vmem:[%s394 + $0x28] sm:$0x3f] %vm340, %v387
        %401 = vrot.lane.b32.xlu0 %v331, 125
        %v402 = vpop.permute.xlu0 %401
        %403 = vrot.lane.b32.xlu0 %v332, 125
        %v404 = vpop.permute.xlu0 %403
        %405 = vrot.lane.b32.xlu0 %v333, 125
        %v406 = vpop.permute.xlu0 %405
        %407 = vrot.lane.b32.xlu0 %v334, 125
        %v408 = vpop.permute.xlu0 %407
        %409 = vrot.lane.b32.xlu0 %v335, 125
        %v410 = vpop.permute.xlu0 %409
        %411 = vrot.lane.b32.xlu0 %v336, 125
        %v412 = vpop.permute.xlu0 %411
        %s419 = scalar_lea.vmem [#allocation3], 144
        %420 = vst.msk [vmem:[%s419] sm:$0xff] %vm337, %v402
        %421 = vst.msk [vmem:[%s419 + $0x8] sm:$0xff] %vm337, %v404
        %422 = vst.msk [vmem:[%s419 + $0x10] sm:$0x3f] %vm340, %v406
        %423 = vst.msk [vmem:[%s419 + $0x18] sm:$0xff] %vm337, %v408
        %424 = vst.msk [vmem:[%s419 + $0x20] sm:$0xff] %vm337, %v410
        %425 = vst.msk [vmem:[%s419 + $0x28] sm:$0x3f] %vm340, %v412
        %426 = vrot.lane.b32.xlu0 %v331, 124
        %v427 = vpop.permute.xlu0 %426
        %428 = vrot.lane.b32.xlu0 %v332, 124
        %v429 = vpop.permute.xlu0 %428
        %430 = vrot.lane.b32.xlu0 %v333, 124
        %v431 = vpop.permute.xlu0 %430
        %432 = vrot.lane.b32.xlu0 %v334, 124
        %v433 = vpop.permute.xlu0 %432
        %434 = vrot.lane.b32.xlu0 %v335, 124
        %v435 = vpop.permute.xlu0 %434
        %436 = vrot.lane.b32.xlu0 %v336, 124
        %v437 = vpop.permute.xlu0 %436
        %s444 = scalar_lea.vmem [#allocation3], 192
        %445 = vst.msk [vmem:[%s444] sm:$0xff] %vm337, %v427
        %446 = vst.msk [vmem:[%s444 + $0x8] sm:$0xff] %vm337, %v429
        %447 = vst.msk [vmem:[%s444 + $0x10] sm:$0x3f] %vm340, %v431
        %448 = vst.msk [vmem:[%s444 + $0x18] sm:$0xff] %vm337, %v433
        %449 = vst.msk [vmem:[%s444 + $0x20] sm:$0xff] %vm337, %v435
        %450 = vst.msk [vmem:[%s444 + $0x28] sm:$0x3f] %vm340, %v437
        %451 = vrot.lane.b32.xlu0 %v331, 123
        %v452 = vpop.permute.xlu0 %451
        %453 = vrot.lane.b32.xlu0 %v332, 123
        %v454 = vpop.permute.xlu0 %453
        %455 = vrot.lane.b32.xlu0 %v333, 123
        %v456 = vpop.permute.xlu0 %455
        %457 = vrot.lane.b32.xlu0 %v334, 123
        %v458 = vpop.permute.xlu0 %457
        %459 = vrot.lane.b32.xlu0 %v335, 123
        %v460 = vpop.permute.xlu0 %459
        %461 = vrot.lane.b32.xlu0 %v336, 123
        %v462 = vpop.permute.xlu0 %461
        %s469 = scalar_lea.vmem [#allocation3], 240
        %470 = vst.msk [vmem:[%s469] sm:$0xff] %vm337, %v452
        %471 = vst.msk [vmem:[%s469 + $0x8] sm:$0xff] %vm337, %v454
        %472 = vst.msk [vmem:[%s469 + $0x10] sm:$0x3f] %vm340, %v456
        %473 = vst.msk [vmem:[%s469 + $0x18] sm:$0xff] %vm337, %v458
        %474 = vst.msk [vmem:[%s469 + $0x20] sm:$0xff] %vm337, %v460
        %475 = vst.msk [vmem:[%s469 + $0x28] sm:$0x3f] %vm340, %v462
        %476 = vrot.lane.b32.xlu0 %v331, 122
        %v477 = vpop.permute.xlu0 %476
        %478 = vrot.lane.b32.xlu0 %v332, 122
        %v479 = vpop.permute.xlu0 %478
        %480 = vrot.lane.b32.xlu0 %v333, 122
        %v481 = vpop.permute.xlu0 %480
        %482 = vrot.lane.b32.xlu0 %v334, 122
        %v483 = vpop.permute.xlu0 %482
        %484 = vrot.lane.b32.xlu0 %v335, 122
        %v485 = vpop.permute.xlu0 %484
        %486 = vrot.lane.b32.xlu0 %v336, 122
        %v487 = vpop.permute.xlu0 %486
        %s494 = scalar_lea.vmem [#allocation3], 288
        %495 = vst.msk [vmem:[%s494] sm:$0xff] %vm337, %v477
        %496 = vst.msk [vmem:[%s494 + $0x8] sm:$0xff] %vm337, %v479
        %497 = vst.msk [vmem:[%s494 + $0x10] sm:$0x3f] %vm340, %v481
        %498 = vst.msk [vmem:[%s494 + $0x18] sm:$0xff] %vm337, %v483
        %499 = vst.msk [vmem:[%s494 + $0x20] sm:$0xff] %vm337, %v485
        %500 = vst.msk [vmem:[%s494 + $0x28] sm:$0x3f] %vm340, %v487
        loop: start=0, step=1, limit=2
        $region37: #{tpu_custom_call.1} parent=27 // loop_pre_header
          _
        $region38: #{tpu_custom_call.1} parent=27 // loop_header
          %s502 = sphi 0, %s506
          %p503 = scmp.ge.s32.totalorder %s502, 2
        $region39: #{tpu_custom_call.1} parent=27 // loop_header_branch
          %505 = sbr.rel (%p503) target = $region43
        $region40: #{tpu_custom_call.1} parent=27 // loop_body
          %s507 = smul.u32 %s502, 8
          %s508 = scalar_lea.vmem [#allocation3], %s507
          %v509 = vld [vmem:[%s508] sm:$0xff]
          %v510 = vld [vmem:[%s508 + $0x18] sm:$0xff]
          %v511 = vstv %s176
          %v512 = vmul.f32 %v511, %v509
          %v513 = vadd.f32 %v512, 0.0
          %v514 = vstv %s225
          %v515 = vmul.f32 %v514, %v510
          %v516 = vadd.f32 %v513, %v515
          %s517 = sadd.s32 %s507, 48
          %s518 = scalar_lea.vmem [#allocation3], %s517
          %v519 = vld [vmem:[%s518] sm:$0xff]
          %v520 = vld [vmem:[%s518 + $0x18] sm:$0xff]
          %v521 = vstv %s177
          %v522 = vmul.f32 %v521, %v519
          %v523 = vadd.f32 %v516, %v522
          %v524 = vstv %s226
          %v525 = vmul.f32 %v524, %v520
          %v526 = vadd.f32 %v523, %v525
          %s527 = sadd.s32 %s507, 96
          %s528 = scalar_lea.vmem [#allocation3], %s527
          %v529 = vld [vmem:[%s528] sm:$0xff]
          %v530 = vld [vmem:[%s528 + $0x18] sm:$0xff]
          %v531 = vstv %s178
          %v532 = vmul.f32 %v531, %v529
          %v533 = vadd.f32 %v526, %v532
          %v534 = vstv %s227
          %v535 = vmul.f32 %v534, %v530
          %v536 = vadd.f32 %v533, %v535
          %s537 = sadd.s32 %s507, 144
          %s538 = scalar_lea.vmem [#allocation3], %s537
          %v539 = vld [vmem:[%s538] sm:$0xff]
          %v540 = vld [vmem:[%s538 + $0x18] sm:$0xff]
          %v541 = vstv %s179
          %v542 = vmul.f32 %v541, %v539
          %v543 = vadd.f32 %v536, %v542
          %v544 = vstv %s228
          %v545 = vmul.f32 %v544, %v540
          %v546 = vadd.f32 %v543, %v545
          %s547 = sadd.s32 %s507, 192
          %s548 = scalar_lea.vmem [#allocation3], %s547
          %v549 = vld [vmem:[%s548] sm:$0xff]
          %v550 = vld [vmem:[%s548 + $0x18] sm:$0xff]
          %v551 = vstv %s180
          %v552 = vmul.f32 %v551, %v549
          %v553 = vadd.f32 %v546, %v552
          %v554 = vstv %s229
          %v555 = vmul.f32 %v554, %v550
          %v556 = vadd.f32 %v553, %v555
          %s557 = sadd.s32 %s507, 240
          %s558 = scalar_lea.vmem [#allocation3], %s557
          %v559 = vld [vmem:[%s558] sm:$0xff]
          %v560 = vld [vmem:[%s558 + $0x18] sm:$0xff]
          %v561 = vstv %s181
          %v562 = vmul.f32 %v561, %v559
          %v563 = vadd.f32 %v556, %v562
          %v564 = vstv %s230
          %v565 = vmul.f32 %v564, %v560
          %v566 = vadd.f32 %v563, %v565
          %s567 = sadd.s32 %s507, 288
          %s568 = scalar_lea.vmem [#allocation3], %s567
          %v569 = vld [vmem:[%s568] sm:$0xff]
          %v570 = vld [vmem:[%s568 + $0x18] sm:$0xff]
          %v571 = vstv %s182
          %v572 = vmul.f32 %v571, %v569
          %v573 = vadd.f32 %v566, %v572
          %v574 = vstv %s231
          %v575 = vmul.f32 %v574, %v570
          %v576 = vadd.f32 %v573, %v575
          %s577 = sadd.s32 %s507, 1
          %s578 = scalar_lea.vmem [#allocation3], %s577
          %v579 = vld [vmem:[%s578] sm:$0xff]
          %v580 = vld [vmem:[%s578 + $0x18] sm:$0xff]
          %v581 = vstv %s183
          %v582 = vmul.f32 %v581, %v579
          %v583 = vadd.f32 %v576, %v582
          %v584 = vstv %s232
          %v585 = vmul.f32 %v584, %v580
          %v586 = vadd.f32 %v583, %v585
          %s587 = sadd.s32 %s577, 48
          %s588 = scalar_lea.vmem [#allocation3], %s587
          %v589 = vld [vmem:[%s588] sm:$0xff]
          %v590 = vld [vmem:[%s588 + $0x18] sm:$0xff]
          %v591 = vstv %s184
          %v592 = vmul.f32 %v591, %v589
          %v593 = vadd.f32 %v586, %v592
          %v594 = vstv %s233
          %v595 = vmul.f32 %v594, %v590
          %v596 = vadd.f32 %v593, %v595
          %s597 = sadd.s32 %s577, 96
          %s598 = scalar_lea.vmem [#allocation3], %s597
          %v599 = vld [vmem:[%s598] sm:$0xff]
          %v600 = vld [vmem:[%s598 + $0x18] sm:$0xff]
          %v601 = vstv %s185
          %v602 = vmul.f32 %v601, %v599
          %v603 = vadd.f32 %v596, %v602
          %v604 = vstv %s234
          %v605 = vmul.f32 %v604, %v600
          %v606 = vadd.f32 %v603, %v605
          %s607 = sadd.s32 %s577, 144
          %s608 = scalar_lea.vmem [#allocation3], %s607
          %v609 = vld [vmem:[%s608] sm:$0xff]
          %v610 = vld [vmem:[%s608 + $0x18] sm:$0xff]
          %v611 = vstv %s186
          %v612 = vmul.f32 %v611, %v609
          %v613 = vadd.f32 %v606, %v612
          %v614 = vstv %s235
          %v615 = vmul.f32 %v614, %v610
          %v616 = vadd.f32 %v613, %v615
          %s617 = sadd.s32 %s577, 192
          %s618 = scalar_lea.vmem [#allocation3], %s617
          %v619 = vld [vmem:[%s618] sm:$0xff]
          %v620 = vld [vmem:[%s618 + $0x18] sm:$0xff]
          %v621 = vstv %s187
          %v622 = vmul.f32 %v621, %v619
          %v623 = vadd.f32 %v616, %v622
          %v624 = vstv %s236
          %v625 = vmul.f32 %v624, %v620
          %v626 = vadd.f32 %v623, %v625
          %s627 = sadd.s32 %s577, 240
          %s628 = scalar_lea.vmem [#allocation3], %s627
          %v629 = vld [vmem:[%s628] sm:$0xff]
          %v630 = vld [vmem:[%s628 + $0x18] sm:$0xff]
          %v631 = vstv %s188
          %v632 = vmul.f32 %v631, %v629
          %v633 = vadd.f32 %v626, %v632
          %v634 = vstv %s237
          %v635 = vmul.f32 %v634, %v630
          %v636 = vadd.f32 %v633, %v635
          %s637 = sadd.s32 %s577, 288
          %s638 = scalar_lea.vmem [#allocation3], %s637
          %v639 = vld [vmem:[%s638] sm:$0xff]
          %v640 = vld [vmem:[%s638 + $0x18] sm:$0xff]
          %v641 = vstv %s189
          %v642 = vmul.f32 %v641, %v639
          %v643 = vadd.f32 %v636, %v642
          %v644 = vstv %s238
          %v645 = vmul.f32 %v644, %v640
          %v646 = vadd.f32 %v643, %v645
          %s647 = sadd.s32 %s507, 2
          %s648 = scalar_lea.vmem [#allocation3], %s647
          %v649 = vld [vmem:[%s648] sm:$0xff]
          %v650 = vld [vmem:[%s648 + $0x18] sm:$0xff]
          %v651 = vstv %s190
          %v652 = vmul.f32 %v651, %v649
          %v653 = vadd.f32 %v646, %v652
          %v654 = vstv %s239
          %v655 = vmul.f32 %v654, %v650
          %v656 = vadd.f32 %v653, %v655
          %s657 = sadd.s32 %s647, 48
          %s658 = scalar_lea.vmem [#allocation3], %s657
          %v659 = vld [vmem:[%s658] sm:$0xff]
          %v660 = vld [vmem:[%s658 + $0x18] sm:$0xff]
          %v661 = vstv %s191
          %v662 = vmul.f32 %v661, %v659
          %v663 = vadd.f32 %v656, %v662
          %v664 = vstv %s240
          %v665 = vmul.f32 %v664, %v660
          %v666 = vadd.f32 %v663, %v665
          %s667 = sadd.s32 %s647, 96
          %s668 = scalar_lea.vmem [#allocation3], %s667
          %v669 = vld [vmem:[%s668] sm:$0xff]
          %v670 = vld [vmem:[%s668 + $0x18] sm:$0xff]
          %v671 = vstv %s192
          %v672 = vmul.f32 %v671, %v669
          %v673 = vadd.f32 %v666, %v672
          %v674 = vstv %s241
          %v675 = vmul.f32 %v674, %v670
          %v676 = vadd.f32 %v673, %v675
          %s677 = sadd.s32 %s647, 144
          %s678 = scalar_lea.vmem [#allocation3], %s677
          %v679 = vld [vmem:[%s678] sm:$0xff]
          %v680 = vld [vmem:[%s678 + $0x18] sm:$0xff]
          %v681 = vstv %s193
          %v682 = vmul.f32 %v681, %v679
          %v683 = vadd.f32 %v676, %v682
          %v684 = vstv %s242
          %v685 = vmul.f32 %v684, %v680
          %v686 = vadd.f32 %v683, %v685
          %s687 = sadd.s32 %s647, 192
          %s688 = scalar_lea.vmem [#allocation3], %s687
          %v689 = vld [vmem:[%s688] sm:$0xff]
          %v690 = vld [vmem:[%s688 + $0x18] sm:$0xff]
          %v691 = vstv %s194
          %v692 = vmul.f32 %v691, %v689
          %v693 = vadd.f32 %v686, %v692
          %v694 = vstv %s243
          %v695 = vmul.f32 %v694, %v690
          %v696 = vadd.f32 %v693, %v695
          %s697 = sadd.s32 %s647, 240
          %s698 = scalar_lea.vmem [#allocation3], %s697
          %v699 = vld [vmem:[%s698] sm:$0xff]
          %v700 = vld [vmem:[%s698 + $0x18] sm:$0xff]
          %v701 = vstv %s195
          %v702 = vmul.f32 %v701, %v699
          %v703 = vadd.f32 %v696, %v702
          %v704 = vstv %s244
          %v705 = vmul.f32 %v704, %v700
          %v706 = vadd.f32 %v703, %v705
          %s707 = sadd.s32 %s647, 288
          %s708 = scalar_lea.vmem [#allocation3], %s707
          %v709 = vld [vmem:[%s708] sm:$0xff]
          %v710 = vld [vmem:[%s708 + $0x18] sm:$0xff]
          %v711 = vstv %s196
          %v712 = vmul.f32 %v711, %v709
          %v713 = vadd.f32 %v706, %v712
          %v714 = vstv %s245
          %v715 = vmul.f32 %v714, %v710
          %v716 = vadd.f32 %v713, %v715
          %s717 = sadd.s32 %s507, 3
          %s718 = scalar_lea.vmem [#allocation3], %s717
          %v719 = vld [vmem:[%s718] sm:$0xff]
          %v720 = vld [vmem:[%s718 + $0x18] sm:$0xff]
          %v721 = vstv %s197
          %v722 = vmul.f32 %v721, %v719
          %v723 = vadd.f32 %v716, %v722
          %v724 = vstv %s246
          %v725 = vmul.f32 %v724, %v720
          %v726 = vadd.f32 %v723, %v725
          %s727 = sadd.s32 %s717, 48
          %s728 = scalar_lea.vmem [#allocation3], %s727
          %v729 = vld [vmem:[%s728] sm:$0xff]
          %v730 = vld [vmem:[%s728 + $0x18] sm:$0xff]
          %v731 = vstv %s198
          %v732 = vmul.f32 %v731, %v729
          %v733 = vadd.f32 %v726, %v732
          %v734 = vstv %s247
          %v735 = vmul.f32 %v734, %v730
          %v736 = vadd.f32 %v733, %v735
          %s737 = sadd.s32 %s717, 96
          %s738 = scalar_lea.vmem [#allocation3], %s737
          %v739 = vld [vmem:[%s738] sm:$0xff]
          %v740 = vld [vmem:[%s738 + $0x18] sm:$0xff]
          %v741 = vstv %s199
          %v742 = vmul.f32 %v741, %v739
          %v743 = vadd.f32 %v736, %v742
          %v744 = vstv %s248
          %v745 = vmul.f32 %v744, %v740
          %v746 = vadd.f32 %v743, %v745
          %s747 = sadd.s32 %s717, 144
          %s748 = scalar_lea.vmem [#allocation3], %s747
          %v749 = vld [vmem:[%s748] sm:$0xff]
          %v750 = vld [vmem:[%s748 + $0x18] sm:$0xff]
          %v751 = vstv %s200
          %v752 = vmul.f32 %v751, %v749
          %v753 = vadd.f32 %v746, %v752
          %v754 = vstv %s249
          %v755 = vmul.f32 %v754, %v750
          %v756 = vadd.f32 %v753, %v755
          %s757 = sadd.s32 %s717, 192
          %s758 = scalar_lea.vmem [#allocation3], %s757
          %v759 = vld [vmem:[%s758] sm:$0xff]
          %v760 = vld [vmem:[%s758 + $0x18] sm:$0xff]
          %v761 = vstv %s201
          %v762 = vmul.f32 %v761, %v759
          %v763 = vadd.f32 %v756, %v762
          %v764 = vstv %s250
          %v765 = vmul.f32 %v764, %v760
          %v766 = vadd.f32 %v763, %v765
          %s767 = sadd.s32 %s717, 240
          %s768 = scalar_lea.vmem [#allocation3], %s767
          %v769 = vld [vmem:[%s768] sm:$0xff]
          %v770 = vld [vmem:[%s768 + $0x18] sm:$0xff]
          %v771 = vstv %s202
          %v772 = vmul.f32 %v771, %v769
          %v773 = vadd.f32 %v766, %v772
          %v774 = vstv %s251
          %v775 = vmul.f32 %v774, %v770
          %v776 = vadd.f32 %v773, %v775
          %s777 = sadd.s32 %s717, 288
          %s778 = scalar_lea.vmem [#allocation3], %s777
          %v779 = vld [vmem:[%s778] sm:$0xff]
          %v780 = vld [vmem:[%s778 + $0x18] sm:$0xff]
          %v781 = vstv %s203
          %v782 = vmul.f32 %v781, %v779
          %v783 = vadd.f32 %v776, %v782
          %v784 = vstv %s252
          %v785 = vmul.f32 %v784, %v780
          %v786 = vadd.f32 %v783, %v785
          %s787 = sadd.s32 %s507, 4
          %s788 = scalar_lea.vmem [#allocation3], %s787
          %v789 = vld [vmem:[%s788] sm:$0xff]
          %v790 = vld [vmem:[%s788 + $0x18] sm:$0xff]
          %v791 = vstv %s204
          %v792 = vmul.f32 %v791, %v789
          %v793 = vadd.f32 %v786, %v792
          %v794 = vstv %s253
          %v795 = vmul.f32 %v794, %v790
          %v796 = vadd.f32 %v793, %v795
          %s797 = sadd.s32 %s787, 48
          %s798 = scalar_lea.vmem [#allocation3], %s797
          %v799 = vld [vmem:[%s798] sm:$0xff]
          %v800 = vld [vmem:[%s798 + $0x18] sm:$0xff]
          %v801 = vstv %s205
          %v802 = vmul.f32 %v801, %v799
          %v803 = vadd.f32 %v796, %v802
          %v804 = vstv %s254
          %v805 = vmul.f32 %v804, %v800
          %v806 = vadd.f32 %v803, %v805
          %s807 = sadd.s32 %s787, 96
          %s808 = scalar_lea.vmem [#allocation3], %s807
          %v809 = vld [vmem:[%s808] sm:$0xff]
          %v810 = vld [vmem:[%s808 + $0x18] sm:$0xff]
          %v811 = vstv %s206
          %v812 = vmul.f32 %v811, %v809
          %v813 = vadd.f32 %v806, %v812
          %v814 = vstv %s255
          %v815 = vmul.f32 %v814, %v810
          %v816 = vadd.f32 %v813, %v815
          %s817 = sadd.s32 %s787, 144
          %s818 = scalar_lea.vmem [#allocation3], %s817
          %v819 = vld [vmem:[%s818] sm:$0xff]
          %v820 = vld [vmem:[%s818 + $0x18] sm:$0xff]
          %v821 = vstv %s207
          %v822 = vmul.f32 %v821, %v819
          %v823 = vadd.f32 %v816, %v822
          %v824 = vstv %s256
          %v825 = vmul.f32 %v824, %v820
          %v826 = vadd.f32 %v823, %v825
          %s827 = sadd.s32 %s787, 192
          %s828 = scalar_lea.vmem [#allocation3], %s827
          %v829 = vld [vmem:[%s828] sm:$0xff]
          %v830 = vld [vmem:[%s828 + $0x18] sm:$0xff]
          %v831 = vstv %s208
          %v832 = vmul.f32 %v831, %v829
          %v833 = vadd.f32 %v826, %v832
          %v834 = vstv %s257
          %v835 = vmul.f32 %v834, %v830
          %v836 = vadd.f32 %v833, %v835
          %s837 = sadd.s32 %s787, 240
          %s838 = scalar_lea.vmem [#allocation3], %s837
          %v839 = vld [vmem:[%s838] sm:$0xff]
          %v840 = vld [vmem:[%s838 + $0x18] sm:$0xff]
          %v841 = vstv %s209
          %v842 = vmul.f32 %v841, %v839
          %v843 = vadd.f32 %v836, %v842
          %v844 = vstv %s258
          %v845 = vmul.f32 %v844, %v840
          %v846 = vadd.f32 %v843, %v845
          %s847 = sadd.s32 %s787, 288
          %s848 = scalar_lea.vmem [#allocation3], %s847
          %v849 = vld [vmem:[%s848] sm:$0xff]
          %v850 = vld [vmem:[%s848 + $0x18] sm:$0xff]
          %v851 = vstv %s210
          %v852 = vmul.f32 %v851, %v849
          %v853 = vadd.f32 %v846, %v852
          %v854 = vstv %s259
          %v855 = vmul.f32 %v854, %v850
          %v856 = vadd.f32 %v853, %v855
          %s857 = sadd.s32 %s507, 5
          %s858 = scalar_lea.vmem [#allocation3], %s857
          %v859 = vld [vmem:[%s858] sm:$0xff]
          %v860 = vld [vmem:[%s858 + $0x18] sm:$0xff]
          %v861 = vstv %s211
          %v862 = vmul.f32 %v861, %v859
          %v863 = vadd.f32 %v856, %v862
          %v864 = vstv %s260
          %v865 = vmul.f32 %v864, %v860
          %v866 = vadd.f32 %v863, %v865
          %s867 = sadd.s32 %s857, 48
          %s868 = scalar_lea.vmem [#allocation3], %s867
          %v869 = vld [vmem:[%s868] sm:$0xff]
          %v870 = vld [vmem:[%s868 + $0x18] sm:$0xff]
          %v871 = vstv %s212
          %v872 = vmul.f32 %v871, %v869
          %v873 = vadd.f32 %v866, %v872
          %v874 = vstv %s261
          %v875 = vmul.f32 %v874, %v870
          %v876 = vadd.f32 %v873, %v875
          %s877 = sadd.s32 %s857, 96
          %s878 = scalar_lea.vmem [#allocation3], %s877
          %v879 = vld [vmem:[%s878] sm:$0xff]
          %v880 = vld [vmem:[%s878 + $0x18] sm:$0xff]
          %v881 = vstv %s213
          %v882 = vmul.f32 %v881, %v879
          %v883 = vadd.f32 %v876, %v882
          %v884 = vstv %s262
          %v885 = vmul.f32 %v884, %v880
          %v886 = vadd.f32 %v883, %v885
          %s887 = sadd.s32 %s857, 144
          %s888 = scalar_lea.vmem [#allocation3], %s887
          %v889 = vld [vmem:[%s888] sm:$0xff]
          %v890 = vld [vmem:[%s888 + $0x18] sm:$0xff]
          %v891 = vstv %s214
          %v892 = vmul.f32 %v891, %v889
          %v893 = vadd.f32 %v886, %v892
          %v894 = vstv %s263
          %v895 = vmul.f32 %v894, %v890
          %v896 = vadd.f32 %v893, %v895
          %s897 = sadd.s32 %s857, 192
          %s898 = scalar_lea.vmem [#allocation3], %s897
          %v899 = vld [vmem:[%s898] sm:$0xff]
          %v900 = vld [vmem:[%s898 + $0x18] sm:$0xff]
          %v901 = vstv %s215
          %v902 = vmul.f32 %v901, %v899
          %v903 = vadd.f32 %v896, %v902
          %v904 = vstv %s264
          %v905 = vmul.f32 %v904, %v900
          %v906 = vadd.f32 %v903, %v905
          %s907 = sadd.s32 %s857, 240
          %s908 = scalar_lea.vmem [#allocation3], %s907
          %v909 = vld [vmem:[%s908] sm:$0xff]
          %v910 = vld [vmem:[%s908 + $0x18] sm:$0xff]
          %v911 = vstv %s216
          %v912 = vmul.f32 %v911, %v909
          %v913 = vadd.f32 %v906, %v912
          %v914 = vstv %s265
          %v915 = vmul.f32 %v914, %v910
          %v916 = vadd.f32 %v913, %v915
          %s917 = sadd.s32 %s857, 288
          %s918 = scalar_lea.vmem [#allocation3], %s917
          %v919 = vld [vmem:[%s918] sm:$0xff]
          %v920 = vld [vmem:[%s918 + $0x18] sm:$0xff]
          %v921 = vstv %s217
          %v922 = vmul.f32 %v921, %v919
          %v923 = vadd.f32 %v916, %v922
          %v924 = vstv %s266
          %v925 = vmul.f32 %v924, %v920
          %v926 = vadd.f32 %v923, %v925
          %s927 = sadd.s32 %s507, 6
          %s928 = scalar_lea.vmem [#allocation3], %s927
          %v929 = vld [vmem:[%s928] sm:$0xff]
          %v930 = vld [vmem:[%s928 + $0x18] sm:$0xff]
          %v931 = vstv %s218
          %v932 = vmul.f32 %v931, %v929
          %v933 = vadd.f32 %v926, %v932
          %v934 = vstv %s267
          %v935 = vmul.f32 %v934, %v930
          %v936 = vadd.f32 %v933, %v935
          %s937 = sadd.s32 %s927, 48
          %s938 = scalar_lea.vmem [#allocation3], %s937
          %v939 = vld [vmem:[%s938] sm:$0xff]
          %v940 = vld [vmem:[%s938 + $0x18] sm:$0xff]
          %v941 = vstv %s219
          %v942 = vmul.f32 %v941, %v939
          %v943 = vadd.f32 %v936, %v942
          %v944 = vstv %s268
          %v945 = vmul.f32 %v944, %v940
          %v946 = vadd.f32 %v943, %v945
          %s947 = sadd.s32 %s927, 96
          %s948 = scalar_lea.vmem [#allocation3], %s947
          %v949 = vld [vmem:[%s948] sm:$0xff]
          %v950 = vld [vmem:[%s948 + $0x18] sm:$0xff]
          %v951 = vstv %s220
          %v952 = vmul.f32 %v951, %v949
          %v953 = vadd.f32 %v946, %v952
          %v954 = vstv %s269
          %v955 = vmul.f32 %v954, %v950
          %v956 = vadd.f32 %v953, %v955
          %s957 = sadd.s32 %s927, 144
          %s958 = scalar_lea.vmem [#allocation3], %s957
          %v959 = vld [vmem:[%s958] sm:$0xff]
          %v960 = vld [vmem:[%s958 + $0x18] sm:$0xff]
          %v961 = vstv %s221
          %v962 = vmul.f32 %v961, %v959
          %v963 = vadd.f32 %v956, %v962
          %v964 = vstv %s270
          %v965 = vmul.f32 %v964, %v960
          %v966 = vadd.f32 %v963, %v965
          %s967 = sadd.s32 %s927, 192
          %s968 = scalar_lea.vmem [#allocation3], %s967
          %v969 = vld [vmem:[%s968] sm:$0xff]
          %v970 = vld [vmem:[%s968 + $0x18] sm:$0xff]
          %v971 = vstv %s222
          %v972 = vmul.f32 %v971, %v969
          %v973 = vadd.f32 %v966, %v972
          %v974 = vstv %s271
          %v975 = vmul.f32 %v974, %v970
          %v976 = vadd.f32 %v973, %v975
          %s977 = sadd.s32 %s927, 240
          %s978 = scalar_lea.vmem [#allocation3], %s977
          %v979 = vld [vmem:[%s978] sm:$0xff]
          %v980 = vld [vmem:[%s978 + $0x18] sm:$0xff]
          %v981 = vstv %s223
          %v982 = vmul.f32 %v981, %v979
          %v983 = vadd.f32 %v976, %v982
          %v984 = vstv %s272
          %v985 = vmul.f32 %v984, %v980
          %v986 = vadd.f32 %v983, %v985
          %s987 = sadd.s32 %s927, 288
          %s988 = scalar_lea.vmem [#allocation3], %s987
          %v989 = vld [vmem:[%s988] sm:$0xff]
          %v990 = vld [vmem:[%s988 + $0x18] sm:$0xff]
          %v991 = vstv %s224
          %v992 = vmul.f32 %v991, %v989
          %v993 = vadd.f32 %v986, %v992
          %v994 = vstv %s273
          %v995 = vmul.f32 %v994, %v990
          %v996 = vadd.f32 %v993, %v995
          %v997 = vstv %s274
          %v998 = vmul.f32 %v996, %v997
          %v999 = vstv %s275
          %v1000 = vadd.f32 %v998, %v999
          %v1001 = vsub.f32 0.0, %v1000
          %v1002 = vmul.f32 %v1001, 1.442695
          %v1003 = vpow.pop %v1002
          %v1004 = vadd.f32 %v1003, 1.0
          %v1005 = vrcp.pop %v1004
          %v1006 = vmul.f32 1.0, %v1005
          %s1007 = scalar_lea.vmem %s150, %s507 [#allocation4]
          %v1008 = vld [vmem:[%s1007] sm:$0xff]
          %v1009 = vld [vmem:[%s1007 + $0x10] sm:$0xff]
          %v1010 = vld [vmem:[%s1007 + $0x20] sm:$0xff]
          %v1011 = vld [vmem:[%s1007 + $0x30] sm:$0xff]
          %v1012 = vmul.f32 %v1006, %v1008
          %v1013 = vmul.f32 %v1006, %v1009
          %v1014 = vmul.f32 %v1006, %v1010
          %v1015 = vmul.f32 %v1006, %v1011
          %s1016 = scalar_lea.vmem %s175, %s507 [#allocation9]
          %1017 = vst.msk [vmem:[%s1016] sm:$0xff] %vm337, %v1012
          %1018 = vst.msk [vmem:[%s1016 + $0x10] sm:$0xff] %vm337, %v1013
          %1019 = vst.msk [vmem:[%s1016 + $0x20] sm:$0xff] %vm337, %v1014
          %1020 = vst.msk [vmem:[%s1016 + $0x30] sm:$0xff] %vm337, %v1015
        $region41: #{tpu_custom_call.1} parent=27 // loop_footer
          %s506 = sadd.s32 1, %s502
        $region42: #{tpu_custom_call.1} parent=27 // loop_footer_branch
          %501 = sbr.rel target = $region38
        $region43: #{tpu_custom_call.1} parent=27 // loop_exit
          _
        %s1021 = sand.u32 %s75, 1
        %s1022 = scalar_lea.sflag [#allocation6], %s1021
        %s1023 = sand.u32 %s75, 1
        %s1024 = smul.addr %s1023, 64
        %s1025 = scalar_lea.vmem [#allocation9], %s1024
        // Predicated region
        $region44: #{tpu_custom_call.1} parent=27 // pred_check
          %p1026 = pneg %p85
        $region45: #{tpu_custom_call.1} parent=27 // pred_check_branch
          %1028 = sbr.rel (%p1026) target = $region47
        $region46: #{tpu_custom_call.1} parent=27 // pred_region
          %s1030 = ssub.s32 1024, 1024
          %1031 = vsyncadd %s1022, %s1030
          %s1032 = smul.addr %s20, 8
          %s1033 = smul.addr %s1032, 128
          %s1034 = scalar_lea.hbm %s2, %s1033
          %s1035 = sshll.u32 %s1025, 4
          %s1036 = int_to_ptr.vmem [resolvable:$true] %s1035
          %1041 = dma.vmem_to_hbm [thread:$0]  %s1036, 1024, %s1034, %s1022, 128, 128, 8
        $region47: #{tpu_custom_call.1} parent=27 // pred_fallthru
          _
      $region28: #{tpu_custom_call.1} parent=5 // pred_fallthru
        _
      %p1042 = scmp.le.s32.totalorder 2, %s15
      // Predicated region
      $region48: #{tpu_custom_call.1} parent=5 // pred_check
        %p1043 = pneg %p1042
      $region49: #{tpu_custom_call.1} parent=5 // pred_check_branch
        %1045 = sbr.rel (%p1043) target = $region51
      $region50: #{tpu_custom_call.1} parent=5 // pred_region
        %s1046 = ssub.s32 %s15, 2
        // Predicated region
        $region52: #{tpu_custom_call.1} parent=50 // pred_check
          %p1047 = pneg %p91
        $region53: #{tpu_custom_call.1} parent=50 // pred_check_branch
          %1049 = sbr.rel (%p1047) target = $region55
        $region54: #{tpu_custom_call.1} parent=50 // pred_region
          %s1050 = sand.u32 %s76, 1
          %s1051 = scalar_lea.sflag [#allocation6], %s1050
          %s1052 = sand.u32 %s76, 1
          %s1053 = smul.addr %s1052, 64
          %s1054 = scalar_lea.vmem [#allocation9], %s1053
          %1055 = dma.done %s1051, 1024
        $region55: #{tpu_custom_call.1} parent=50 // pred_fallthru
          _
      $region51: #{tpu_custom_call.1} parent=5 // pred_fallthru
        _
    $region6: #{tpu_custom_call.1} parent=1 // loop_footer
      %s19 = sadd.s32 1, %s15
    $region7: #{tpu_custom_call.1} parent=1 // loop_footer_branch
      %14 = sbr.rel target = $region3
    $region8: #{tpu_custom_call.1} parent=1 // loop_exit
      _
    %1056 = vsyncpa [#allocation5], 1
    %s1057 = scalar_lea.sflag [#allocation5], 1
    %1058 = vsyncpa %s1057, 1
    %1059 = vsyncpa [#allocation6], 1
    %s1060 = scalar_lea.sflag [#allocation6], 1
    %1061 = vsyncpa %s1060, 1
    %1062 = vsyncpa [#allocation7], 1
    %s1063 = scalar_lea.sflag [#allocation7], 1
    %1064 = vsyncpa %s1063, 1

</llo_original>
